<compile_context>
chip_gen: v7x
topology: tpu7x:2x2x1
jax: 0.10.0
libtpu: 0.0.40
codegen_flags: <defaults>
</compile_context>

<pallas_src>
import functools
import math

import jax
import jax.numpy as jnp
from jax.experimental import pallas as pl
from jax.experimental.pallas import tpu as pltpu


_INV_SQRT2 = 0.7071067811865476


def _erf(z):
  # Abramowitz & Stegun 7.1.26 polynomial (max abs err ~1.5e-7): matches
  # nn.GELU() (approximate='none') to f32 precision without relying on a
  # Mosaic erf lowering.  Uses only exp / mul / add -> VPU + EUP.
  a1, a2, a3, a4, a5 = (0.254829592, -0.284496736, 1.421413741,
                        -1.453152027, 1.061405429)
  p = 0.3275911
  s = jnp.where(z < 0.0, -1.0, 1.0)
  za = jnp.abs(z)
  t = 1.0 / (1.0 + p * za)
  poly = ((((a5 * t + a4) * t + a3) * t + a2) * t + a1) * t
  return s * (1.0 - poly * jnp.exp(-za * za))


def _gelu(x):
  return 0.5 * x * (1.0 + _erf(x * _INV_SQRT2))


def _layernorm(x, g, b, eps):
  # Biased variance, like torch LayerNorm.  Stats kept in f32 (v5e-safe).
  mean = jnp.mean(x, axis=-1, keepdims=True)
  xc = x - mean
  var = jnp.mean(xc * xc, axis=-1, keepdims=True)
  return xc * jax.lax.rsqrt(var + eps) * g + b


# ----------------------------- Pallas kernels ------------------------------

def _embed_kernel(xp_ref, pw_ref, pb_ref, cls_ref, pos_ref, o_ref, *, B, nP):
  """Patch-embed matmul + bias, prepend cls token, add positional embedding."""
  S = nP + 1
  tok = (jnp.dot(xp_ref[...], pw_ref[...], preferred_element_type=jnp.float32)
         + pb_ref[...])                                  # (B*nP, E)
  pos = pos_ref[...]                                     # (S, E)
  cls_row = cls_ref[...] + pos[0:1, :]                   # (1, E)
  pos_tok = pos[1:, :]                                   # (nP, E)
  for b in range(B):
    o_ref[b * S:b * S + 1, :] = cls_row
    o_ref[b * S + 1:(b + 1) * S, :] = tok[b * nP:(b + 1) * nP, :] + pos_tok


def _block_kernel(x_ref, hm_ref, n1g_ref, n1b_ref, wqkv_ref, wo_ref,
                  n2g_ref, n2b_ref, fc1w_ref, fc1b_ref, fc2w_ref, fc2b_ref,
                  o_ref, attn_ref, *, B, S, E, Dh, eps):
  """One full transformer block, fully fused, all intermediates in VMEM."""
  x = x_ref[...]                                         # (B*S, E)

  # --- attention branch -----------------------------------------------------
  xn = _layernorm(x, n1g_ref[...], n1b_ref[...], eps)
  qkv = jnp.dot(xn, wqkv_ref[...], preferred_element_type=jnp.float32)  # (M,3E)
  q = qkv[:, :E]
  k = qkv[:, E:2 * E]
  v = qkv[:, 2 * E:]

  hm = hm_ref[...]                                       # (E, E) block-diag head mask
  scale = 1.0 / math.sqrt(Dh)

  # torch MHA batch_first=False fed (B, S, E): sequence axis = batch axis
  # (L = B), "batch" axis = token axis (N = S).  For each query batch index b
  # we attend over key batch indices b' at the same token position / head.
  # (qb * kb') @ hm broadcasts every head's score across its Dh lanes, so the
  # whole softmax is lane-dense elementwise math -- no tiny (2,16) tiles.
  for b in range(B):
    qb = q[b * S:(b + 1) * S, :]                         # (S, E)
    scores = []
    for bp in range(B):
      kb = k[bp * S:(bp + 1) * S, :]
      scores.append(
          jnp.dot(qb * kb, hm, preferred_element_type=jnp.float32) * scale)
    m = scores[0]
    for bp in range(1, B):
      m = jnp.maximum(m, scores[bp])
    exps = [jnp.exp(s - m) for s in scores]
    denom = exps[0]
    for bp in range(1, B):
      denom = denom + exps[bp]
    inv = pl.reciprocal(denom, approx=True)              # EUP slot, ~free
    ob = jnp.zeros_like(qb)
    for bp in range(B):
      ob = ob + (exps[bp] * inv) * v[bp * S:(bp + 1) * S, :]
    attn_ref[b * S:(b + 1) * S, :] = ob

  proj = jnp.dot(attn_ref[...], wo_ref[...],
                 preferred_element_type=jnp.float32)     # out_proj (no bias)
  x1 = x + proj                                          # residual 1

  # --- MLP branch -------------------------------------------------------------
  xn2 = _layernorm(x1, n2g_ref[...], n2b_ref[...], eps)
  h = (jnp.dot(xn2, fc1w_ref[...], preferred_element_type=jnp.float32)
       + fc1b_ref[...])
  h = _gelu(h)                                           # exact-erf GELU, in-kernel
  h = (jnp.dot(h, fc2w_ref[...], preferred_element_type=jnp.float32)
       + fc2b_ref[...])
  o_ref[...] = x1 + h                                    # residual 2


def _head_kernel(x_ref, g_ref, b_ref, w_ref, hb_ref, o_ref, *, eps):
  """Final LayerNorm (on cls tokens) + classification head, fused."""
  xn = _layernorm(x_ref[...], g_ref[...], b_ref[...], eps)
  o_ref[...] = (jnp.dot(xn, w_ref[...], preferred_element_type=jnp.float32)
                + hb_ref[...])


# ------------------------------ wrappers ------------------------------------

def embed_forward(xp, pw, pb, cls_tok, pos, *, B, nP, E):
  S = nP + 1
  M = B * S
  K = xp.shape[1]
  kernel = functools.partial(_embed_kernel, B=B, nP=nP)
  return pl.pallas_call(
      kernel,
      grid=(1,),
      in_specs=[
          pl.BlockSpec((B * nP, K), lambda i: (0, 0)),
          pl.BlockSpec((K, E), lambda i: (0, 0)),
          pl.BlockSpec((1, E), lambda i: (0, 0)),
          pl.BlockSpec((1, E), lambda i: (0, 0)),
          pl.BlockSpec((S, E), lambda i: (0, 0)),
      ],
      out_specs=pl.BlockSpec((M, E), lambda i: (0, 0)),
      out_shape=jax.ShapeDtypeStruct((M, E), jnp.float32),
  )(xp, pw, pb.reshape(1, E), cls_tok.reshape(1, E), pos.reshape(S, E))


def block_forward(p, xf, hm, *, B, S, E, H, eps=1e-5):
  Dh = E // H
  M = B * S
  HID = p["fc1_w"].shape[1]
  kernel = functools.partial(_block_kernel, B=B, S=S, E=E, Dh=Dh, eps=eps)
  return pl.pallas_call(
      kernel,
      grid=(1,),
      in_specs=[
          pl.BlockSpec((M, E), lambda i: (0, 0)),         # x
          pl.BlockSpec((E, E), lambda i: (0, 0)),         # head mask
          pl.BlockSpec((1, E), lambda i: (0, 0)),         # norm1 gamma
          pl.BlockSpec((1, E), lambda i: (0, 0)),         # norm1 beta
          pl.BlockSpec((E, 3 * E), lambda i: (0, 0)),     # fused wqkv
          pl.BlockSpec((E, E), lambda i: (0, 0)),         # wo
          pl.BlockSpec((1, E), lambda i: (0, 0)),         # norm2 gamma
          pl.BlockSpec((1, E), lambda i: (0, 0)),         # norm2 beta
          pl.BlockSpec((E, HID), lambda i: (0, 0)),       # fc1_w
          pl.BlockSpec((1, HID), lambda i: (0, 0)),       # fc1_b
          pl.BlockSpec((HID, E), lambda i: (0, 0)),       # fc2_w
          pl.BlockSpec((1, E), lambda i: (0, 0)),         # fc2_b
      ],
      out_specs=pl.BlockSpec((M, E), lambda i: (0, 0)),
      out_shape=jax.ShapeDtypeStruct((M, E), jnp.float32),
      scratch_shapes=[pltpu.VMEM((M, E), jnp.float32)],   # attention output
  )(xf, hm,
    p["norm1_g"].reshape(1, E), p["norm1_b"].reshape(1, E),
    p["wqkv"], p["wo"],
    p["norm2_g"].reshape(1, E), p["norm2_b"].reshape(1, E),
    p["fc1_w"], p["fc1_b"].reshape(1, HID),
    p["fc2_w"], p["fc2_b"].reshape(1, E))


def head_forward(xcls, g, b, w, hb, eps=1e-5):
  Bn, E = xcls.shape
  C = w.shape[1]
  kernel = functools.partial(_head_kernel, eps=eps)
  return pl.pallas_call(
      kernel,
      grid=(1,),
      in_specs=[
          pl.BlockSpec((Bn, E), lambda i: (0, 0)),
          pl.BlockSpec((1, E), lambda i: (0, 0)),
          pl.BlockSpec((1, E), lambda i: (0, 0)),
          pl.BlockSpec((E, C), lambda i: (0, 0)),
          pl.BlockSpec((1, C), lambda i: (0, 0)),
      ],
      out_specs=pl.BlockSpec((Bn, C), lambda i: (0, 0)),
      out_shape=jax.ShapeDtypeStruct((Bn, C), jnp.float32),
  )(xcls, g.reshape(1, E), b.reshape(1, E), w, hb.reshape(1, C))


# ------------------------------ model (glue) -------------------------------

def init_params(key, *, img_size, patch_size, in_chans, num_classes,
                embed_dim, depth, mlp_ratio):
  num_patches = (img_size // patch_size) ** 2
  hidden = int(embed_dim * mlp_ratio)
  keys = iter(jax.random.split(key, 8 + depth * 8))

  def rnd(shape, scale=0.02):
    return (scale * jax.random.normal(next(keys), shape)).astype(jnp.float32)

  params = {
      "patch_w": rnd((embed_dim, in_chans, patch_size, patch_size)),
      "patch_b": rnd((embed_dim,)),
      "cls_token": rnd((1, 1, embed_dim)),
      "pos_embed": rnd((1, num_patches + 1, embed_dim)),
      "norm_g": jnp.ones((embed_dim,), jnp.float32),
      "norm_b": jnp.zeros((embed_dim,), jnp.float32),
      "head_w": rnd((embed_dim, num_classes)),
      "head_b": rnd((num_classes,)),
      "blocks": [],
  }
  for _ in range(depth):
    params["blocks"].append({
        "norm1_g": jnp.ones((embed_dim,), jnp.float32),
        "norm1_b": jnp.zeros((embed_dim,), jnp.float32),
        "wqkv": rnd((embed_dim, 3 * embed_dim)),   # qkv_bias=False -> no bias
        "wo": rnd((embed_dim, embed_dim)),         # out_proj bias also disabled
        "norm2_g": jnp.ones((embed_dim,), jnp.float32),
        "norm2_b": jnp.zeros((embed_dim,), jnp.float32),
        "fc1_w": rnd((embed_dim, hidden)),
        "fc1_b": rnd((hidden,)),
        "fc2_w": rnd((hidden, embed_dim)),
        "fc2_b": rnd((embed_dim,)),
    })
  return params


def maxvit_forward(params, x, *, patch_size, embed_dim, num_heads):
  B, C, Himg, Wimg = x.shape
  ps = patch_size
  nH, nW = Himg // ps, Wimg // ps
  nP = nH * nW
  E = embed_dim
  S = nP + 1
  Dh = E // num_heads

  # patch_embed: Conv2d(kernel=stride=patch) == per-patch matmul.
  # TODO(synk): the im2col reshape/transpose stays as one host-side XLA op.
  xp = x.reshape(B, C, nH, ps, nW, ps).transpose(0, 2, 4, 1, 3, 5)
  xp = xp.reshape(B * nP, C * ps * ps)
  pw = params["patch_w"].reshape(E, C * ps * ps).T

  xf = embed_forward(xp, pw, params["patch_b"], params["cls_token"],
                     params["pos_embed"][0, :S], B=B, nP=nP, E=E)
  # dropout layers are no-ops (p=0.0); drop_path is Identity.

  # Block-diagonal head mask: hm[e, e'] = 1 iff e, e' are in the same head.
  idx = jnp.arange(E)
  hm = (idx[:, None] // Dh == idx[None, :] // Dh).astype(jnp.float32)

  for p in params["blocks"]:
    xf = block_forward(p, xf, hm, B=B, S=S, E=E, H=num_heads)

  xcls = xf.reshape(B, S, E)[:, 0]                       # cls rows, (B, E)
  return head_forward(xcls, params["norm_g"], params["norm_b"],
                      params["head_w"], params["head_b"])  # (B, classes)


if __name__ == "__main__":
  # Small config consistent with the module's __init__ signature.
  img_size, patch_size, in_chans = 16, 8, 1
  embed_dim, depth, num_heads, mlp_ratio = 64, 2, 4, 4.0
  num_classes = 1
  B = 2

  key = jax.random.PRNGKey(0)
  pkey, xkey = jax.random.split(key)
  params = init_params(pkey, img_size=img_size, patch_size=patch_size,
                       in_chans=in_chans, num_classes=num_classes,
                       embed_dim=embed_dim, depth=depth, mlp_ratio=mlp_ratio)
  x = jax.random.normal(xkey, (B, in_chans, img_size, img_size),
                        dtype=jnp.float32)

  fwd = jax.jit(functools.partial(maxvit_forward, patch_size=patch_size,
                                  embed_dim=embed_dim, num_heads=num_heads))
  out = fwd(params, x)
  jax.block_until_ready(out)
  assert out.shape == (B, num_classes), out.shape
  print("KERNEL_OK")
</pallas_src>

<mosaic_0001>
module attributes {stable_mosaic.version = 11 : i64} {
  func.func @_embed_kernel(%arg0: i32, %arg1: memref<8x64xf32, #tpu.memory_space<vmem>>, %arg2: memref<64x64xf32, #tpu.memory_space<vmem>>, %arg3: memref<1x64xf32, #tpu.memory_space<vmem>>, %arg4: memref<1x64xf32, #tpu.memory_space<vmem>>, %arg5: memref<5x64xf32, #tpu.memory_space<vmem>>, %arg6: memref<10x64xf32, #tpu.memory_space<vmem>>) attributes {dimension_semantics = [#tpu.dimension_semantics<arbitrary>], iteration_bounds = array<i64: 1>, scalar_prefetch = 0 : i64, scratch_operands = 0 : i64, tpu.core_type = #tpu.core_type<tc>, window_params = [{pipeline_mode = #tpu.pipeline_mode<synchronous>, transform_indices = @transform_0, window_bounds = array<i64: 8, 64>}, {pipeline_mode = #tpu.pipeline_mode<synchronous>, transform_indices = @transform_1, window_bounds = array<i64: 64, 64>}, {pipeline_mode = #tpu.pipeline_mode<synchronous>, transform_indices = @transform_2, window_bounds = array<i64: 1, 64>}, {pipeline_mode = #tpu.pipeline_mode<synchronous>, transform_indices = @transform_3, window_bounds = array<i64: 1, 64>}, {pipeline_mode = #tpu.pipeline_mode<synchronous>, transform_indices = @transform_4, window_bounds = array<i64: 5, 64>}, {pipeline_mode = #tpu.pipeline_mode<synchronous>, transform_indices = @transform_5, window_bounds = array<i64: 10, 64>}]} {
    %c0 = arith.constant 0 : index
    %c0_0 = arith.constant 0 : index
    %0 = vector.load %arg1[%c0, %c0_0] : memref<8x64xf32, #tpu.memory_space<vmem>>, vector<8x64xf32>
    %c0_1 = arith.constant 0 : index
    %c0_2 = arith.constant 0 : index
    %1 = vector.load %arg2[%c0_1, %c0_2] : memref<64x64xf32, #tpu.memory_space<vmem>>, vector<64x64xf32>
    %cst = arith.constant dense<0.000000e+00> : vector<8x64xf32>
    %2 = tpu.matmul %0, %1, %cst {dimension_numbers = #tpu.dot_dimension_numbers<[1], [0], [0], [1], [0, 0, 1, 1], [], []>} : vector<8x64xf32>, vector<64x64xf32>, vector<8x64xf32> -> vector<8x64xf32>
    %c0_3 = arith.constant 0 : index
    %c0_4 = arith.constant 0 : index
    %3 = vector.load %arg3[%c0_3, %c0_4] : memref<1x64xf32, #tpu.memory_space<vmem>>, vector<1x64xf32>
    %4 = vector.broadcast %3 : vector<1x64xf32> to vector<8x64xf32>
    %5 = arith.addf %2, %4 : vector<8x64xf32>
    %c0_5 = arith.constant 0 : index
    %c0_6 = arith.constant 0 : index
    %6 = vector.load %arg5[%c0_5, %c0_6] : memref<5x64xf32, #tpu.memory_space<vmem>>, vector<5x64xf32>
    %c0_7 = arith.constant 0 : index
    %c0_8 = arith.constant 0 : index
    %7 = vector.load %arg4[%c0_7, %c0_8] : memref<1x64xf32, #tpu.memory_space<vmem>>, vector<1x64xf32>
    %8 = vector.extract_strided_slice %6 {offsets = [0, 0], sizes = [1, 64], strides = [1, 1]} : vector<5x64xf32> to vector<1x64xf32>
    %9 = arith.addf %7, %8 : vector<1x64xf32>
    %10 = vector.extract_strided_slice %6 {offsets = [1, 0], sizes = [4, 64], strides = [1, 1]} : vector<5x64xf32> to vector<4x64xf32>
    %c0_9 = arith.constant 0 : index
    %c0_10 = arith.constant 0 : index
    %11 = vector.load %arg6[%c0_9, %c0_10] : memref<10x64xf32, #tpu.memory_space<vmem>>, vector<1x64xf32>
    tpu.vector_store %arg6[%c0_9, %c0_10], %9 {strides = array<i32>} : memref<10x64xf32, #tpu.memory_space<vmem>>, vector<1x64xf32>,
    %12 = vector.extract_strided_slice %5 {offsets = [0, 0], sizes = [4, 64], strides = [1, 1]} : vector<8x64xf32> to vector<4x64xf32>
    %13 = arith.addf %12, %10 : vector<4x64xf32>
    %c1 = arith.constant 1 : index
    %c0_11 = arith.constant 0 : index
    %14 = vector.load %arg6[%c1, %c0_11] : memref<10x64xf32, #tpu.memory_space<vmem>>, vector<4x64xf32>
    tpu.vector_store %arg6[%c1, %c0_11], %13 {strides = array<i32>} : memref<10x64xf32, #tpu.memory_space<vmem>>, vector<4x64xf32>,
    %c5 = arith.constant 5 : index
    %c0_12 = arith.constant 0 : index
    %15 = vector.load %arg6[%c5, %c0_12] : memref<10x64xf32, #tpu.memory_space<vmem>>, vector<1x64xf32>
    tpu.vector_store %arg6[%c5, %c0_12], %9 {strides = array<i32>} : memref<10x64xf32, #tpu.memory_space<vmem>>, vector<1x64xf32>,
    %16 = vector.extract_strided_slice %5 {offsets = [4, 0], sizes = [4, 64], strides = [1, 1]} : vector<8x64xf32> to vector<4x64xf32>
    %17 = arith.addf %16, %10 : vector<4x64xf32>
    %c6 = arith.constant 6 : index
    %c0_13 = arith.constant 0 : index
    %18 = vector.load %arg6[%c6, %c0_13] : memref<10x64xf32, #tpu.memory_space<vmem>>, vector<4x64xf32>
    tpu.vector_store %arg6[%c6, %c0_13], %17 {strides = array<i32>} : memref<10x64xf32, #tpu.memory_space<vmem>>, vector<4x64xf32>,
    return
  }
  func.func @transform_0(%arg0: i32) -> (i32, i32) {
    %c0_i32 = arith.constant 0 : i32
    %c0_i32_0 = arith.constant 0 : i32
    %c0_i32_1 = arith.constant 0 : i32
    return %c0_i32, %c0_i32_0 : i32, i32
  }
  func.func @transform_1(%arg0: i32) -> (i32, i32) {
    %c0_i32 = arith.constant 0 : i32
    %c0_i32_0 = arith.constant 0 : i32
    %c0_i32_1 = arith.constant 0 : i32
    return %c0_i32, %c0_i32_0 : i32, i32
  }
  func.func @transform_2(%arg0: i32) -> (i32, i32) {
    %c0_i32 = arith.constant 0 : i32
    %c0_i32_0 = arith.constant 0 : i32
    %c0_i32_1 = arith.constant 0 : i32
    return %c0_i32, %c0_i32_0 : i32, i32
  }
  func.func @transform_3(%arg0: i32) -> (i32, i32) {
    %c0_i32 = arith.constant 0 : i32
    %c0_i32_0 = arith.constant 0 : i32
    %c0_i32_1 = arith.constant 0 : i32
    return %c0_i32, %c0_i32_0 : i32, i32
  }
  func.func @transform_4(%arg0: i32) -> (i32, i32) {
    %c0_i32 = arith.constant 0 : i32
    %c0_i32_0 = arith.constant 0 : i32
    %c0_i32_1 = arith.constant 0 : i32
    return %c0_i32, %c0_i32_0 : i32, i32
  }
  func.func @transform_5(%arg0: i32) -> (i32, i32) {
    %c0_i32 = arith.constant 0 : i32
    %c0_i32_0 = arith.constant 0 : i32
    %c0_i32_1 = arith.constant 0 : i32
    return %c0_i32, %c0_i32_0 : i32, i32
  }
}

module attributes {stable_mosaic.version = 11 : i64} {
  func.func @_block_kernel(%arg0: i32, %arg1: memref<10x64xf32, #tpu.memory_space<vmem>>, %arg2: memref<64x64xf32, #tpu.memory_space<vmem>>, %arg3: memref<1x64xf32, #tpu.memory_space<vmem>>, %arg4: memref<1x64xf32, #tpu.memory_space<vmem>>, %arg5: memref<64x192xf32, #tpu.memory_space<vmem>>, %arg6: memref<64x64xf32, #tpu.memory_space<vmem>>, %arg7: memref<1x64xf32, #tpu.memory_space<vmem>>, %arg8: memref<1x64xf32, #tpu.memory_space<vmem>>, %arg9: memref<64x256xf32, #tpu.memory_space<vmem>>, %arg10: memref<1x256xf32, #tpu.memory_space<vmem>>, %arg11: memref<256x64xf32, #tpu.memory_space<vmem>>, %arg12: memref<1x64xf32, #tpu.memory_space<vmem>>, %arg13: memref<10x64xf32, #tpu.memory_space<vmem>>, %arg14: memref<10x64xf32, #tpu.memory_space<vmem>>) attributes {dimension_semantics = [#tpu.dimension_semantics<arbitrary>], iteration_bounds = array<i64: 1>, scalar_prefetch = 0 : i64, scratch_operands = 1 : i64, tpu.core_type = #tpu.core_type<tc>, window_params = [{pipeline_mode = #tpu.pipeline_mode<synchronous>, transform_indices = @transform_0, window_bounds = array<i64: 10, 64>}, {pipeline_mode = #tpu.pipeline_mode<synchronous>, transform_indices = @transform_1, window_bounds = array<i64: 64, 64>}, {pipeline_mode = #tpu.pipeline_mode<synchronous>, transform_indices = @transform_2, window_bounds = array<i64: 1, 64>}, {pipeline_mode = #tpu.pipeline_mode<synchronous>, transform_indices = @transform_3, window_bounds = array<i64: 1, 64>}, {pipeline_mode = #tpu.pipeline_mode<synchronous>, transform_indices = @transform_4, window_bounds = array<i64: 64, 192>}, {pipeline_mode = #tpu.pipeline_mode<synchronous>, transform_indices = @transform_5, window_bounds = array<i64: 64, 64>}, {pipeline_mode = #tpu.pipeline_mode<synchronous>, transform_indices = @transform_6, window_bounds = array<i64: 1, 64>}, {pipeline_mode = #tpu.pipeline_mode<synchronous>, transform_indices = @transform_7, window_bounds = array<i64: 1, 64>}, {pipeline_mode = #tpu.pipeline_mode<synchronous>, transform_indices = @transform_8, window_bounds = array<i64: 64, 256>}, {pipeline_mode = #tpu.pipeline_mode<synchronous>, transform_indices = @transform_9, window_bounds = array<i64: 1, 256>}, {pipeline_mode = #tpu.pipeline_mode<synchronous>, transform_indices = @transform_10, window_bounds = array<i64: 256, 64>}, {pipeline_mode = #tpu.pipeline_mode<synchronous>, transform_indices = @transform_11, window_bounds = array<i64: 1, 64>}, {pipeline_mode = #tpu.pipeline_mode<synchronous>, transform_indices = @transform_12, window_bounds = array<i64: 10, 64>}]} {
    %c0 = arith.constant 0 : index
    %c0_0 = arith.constant 0 : index
    %0 = vector.load %arg1[%c0, %c0_0] : memref<10x64xf32, #tpu.memory_space<vmem>>, vector<10x64xf32>
    %c0_1 = arith.constant 0 : index
    %c0_2 = arith.constant 0 : index
    %1 = vector.load %arg3[%c0_1, %c0_2] : memref<1x64xf32, #tpu.memory_space<vmem>>, vector<1x64xf32>
    %c0_3 = arith.constant 0 : index
    %c0_4 = arith.constant 0 : index
    %2 = vector.load %arg4[%c0_3, %c0_4] : memref<1x64xf32, #tpu.memory_space<vmem>>, vector<1x64xf32>
    %cst = arith.constant dense<0.000000e+00> : vector<10xf32>
    %3 = vector.multi_reduction <add>, %0, %cst [1] : vector<10x64xf32> to vector<10xf32>
    %4 = vector.shape_cast %3 : vector<10xf32> to vector<10x1xf32>
    %cst_5 = arith.constant 6.400000e+01 : f32
    %5 = vector.broadcast %cst_5 : f32 to vector<10x1xf32>
    %6 = arith.divf %4, %5 : vector<10x1xf32>
    %7 = vector.broadcast %6 : vector<10x1xf32> to vector<10x64xf32>
    %8 = arith.subf %0, %7 : vector<10x64xf32>
    %9 = arith.mulf %8, %8 : vector<10x64xf32>
    %cst_6 = arith.constant dense<0.000000e+00> : vector<10xf32>
    %10 = vector.multi_reduction <add>, %9, %cst_6 [1] : vector<10x64xf32> to vector<10xf32>
    %11 = vector.shape_cast %10 : vector<10xf32> to vector<10x1xf32>
    %cst_7 = arith.constant 6.400000e+01 : f32
    %12 = vector.broadcast %cst_7 : f32 to vector<10x1xf32>
    %13 = arith.divf %11, %12 : vector<10x1xf32>
    %cst_8 = arith.constant 9.99999974E-6 : f32
    %14 = vector.broadcast %cst_8 : f32 to vector<10x1xf32>
    %15 = arith.addf %13, %14 : vector<10x1xf32>
    %16 = math.rsqrt %15 : vector<10x1xf32>
    %17 = vector.broadcast %16 : vector<10x1xf32> to vector<10x64xf32>
    %18 = arith.mulf %8, %17 : vector<10x64xf32>
    %19 = vector.broadcast %1 : vector<1x64xf32> to vector<10x64xf32>
    %20 = arith.mulf %18, %19 : vector<10x64xf32>
    %21 = vector.broadcast %2 : vector<1x64xf32> to vector<10x64xf32>
    %22 = arith.addf %20, %21 : vector<10x64xf32>
    %c0_9 = arith.constant 0 : index
    %c0_10 = arith.constant 0 : index
    %23 = vector.load %arg5[%c0_9, %c0_10] : memref<64x192xf32, #tpu.memory_space<vmem>>, vector<64x192xf32>
    %cst_11 = arith.constant dense<0.000000e+00> : vector<10x192xf32>
    %24 = tpu.matmul %22, %23, %cst_11 {dimension_numbers = #tpu.dot_dimension_numbers<[1], [0], [0], [1], [0, 0, 1, 1], [], []>} : vector<10x64xf32>, vector<64x192xf32>, vector<10x192xf32> -> vector<10x192xf32>
    %25 = vector.extract_strided_slice %24 {offsets = [0, 0], sizes = [10, 64], strides = [1, 1]} : vector<10x192xf32> to vector<10x64xf32>
    %26 = vector.extract_strided_slice %24 {offsets = [0, 64], sizes = [10, 64], strides = [1, 1]} : vector<10x192xf32> to vector<10x64xf32>
    %27 = vector.extract_strided_slice %24 {offsets = [0, 128], sizes = [10, 64], strides = [1, 1]} : vector<10x192xf32> to vector<10x64xf32>
    %c0_12 = arith.constant 0 : index
    %c0_13 = arith.constant 0 : index
    %28 = vector.load %arg2[%c0_12, %c0_13] : memref<64x64xf32, #tpu.memory_space<vmem>>, vector<64x64xf32>
    %29 = vector.extract_strided_slice %25 {offsets = [0, 0], sizes = [5, 64], strides = [1, 1]} : vector<10x64xf32> to vector<5x64xf32>
    %30 = vector.extract_strided_slice %26 {offsets = [0, 0], sizes = [5, 64], strides = [1, 1]} : vector<10x64xf32> to vector<5x64xf32>
    %31 = arith.mulf %29, %30 : vector<5x64xf32>
    %cst_14 = arith.constant dense<0.000000e+00> : vector<5x64xf32>
    %32 = tpu.matmul %31, %28, %cst_14 {dimension_numbers = #tpu.dot_dimension_numbers<[1], [0], [0], [1], [0, 0, 1, 1], [], []>} : vector<5x64xf32>, vector<64x64xf32>, vector<5x64xf32> -> vector<5x64xf32>
    %cst_15 = arith.constant 2.500000e-01 : f32
    %33 = vector.broadcast %cst_15 : f32 to vector<5x64xf32>
    %34 = arith.mulf %32, %33 : vector<5x64xf32>
    %35 = vector.extract_strided_slice %26 {offsets = [5, 0], sizes = [5, 64], strides = [1, 1]} : vector<10x64xf32> to vector<5x64xf32>
    %36 = arith.mulf %29, %35 : vector<5x64xf32>
    %cst_16 = arith.constant dense<0.000000e+00> : vector<5x64xf32>
    %37 = tpu.matmul %36, %28, %cst_16 {dimension_numbers = #tpu.dot_dimension_numbers<[1], [0], [0], [1], [0, 0, 1, 1], [], []>} : vector<5x64xf32>, vector<64x64xf32>, vector<5x64xf32> -> vector<5x64xf32>
    %cst_17 = arith.constant 2.500000e-01 : f32
    %38 = vector.broadcast %cst_17 : f32 to vector<5x64xf32>
    %39 = arith.mulf %37, %38 : vector<5x64xf32>
    %40 = arith.maximumf %34, %39 : vector<5x64xf32>
    %41 = arith.subf %34, %40 : vector<5x64xf32>
    %42 = math.exp %41 : vector<5x64xf32>
    %43 = arith.subf %39, %40 : vector<5x64xf32>
    %44 = math.exp %43 : vector<5x64xf32>
    %45 = arith.addf %42, %44 : vector<5x64xf32>
    %46 = tpu.reciprocal %45 {approx = true} : vector<5x64xf32> -> vector<5x64xf32>
    %cst_18 = arith.constant 0.000000e+00 : f32
    %47 = vector.broadcast %cst_18 : f32 to vector<5x64xf32>
    %48 = arith.mulf %42, %46 : vector<5x64xf32>
    %49 = vector.extract_strided_slice %27 {offsets = [0, 0], sizes = [5, 64], strides = [1, 1]} : vector<10x64xf32> to vector<5x64xf32>
    %50 = arith.mulf %48, %49 : vector<5x64xf32>
    %51 = arith.addf %47, %50 : vector<5x64xf32>
    %52 = arith.mulf %44, %46 : vector<5x64xf32>
    %53 = vector.extract_strided_slice %27 {offsets = [5, 0], sizes = [5, 64], strides = [1, 1]} : vector<10x64xf32> to vector<5x64xf32>
    %54 = arith.mulf %52, %53 : vector<5x64xf32>
    %55 = arith.addf %51, %54 : vector<5x64xf32>
    %c0_19 = arith.constant 0 : index
    %c0_20 = arith.constant 0 : index
    %56 = vector.load %arg14[%c0_19, %c0_20] : memref<10x64xf32, #tpu.memory_space<vmem>>, vector<5x64xf32>
    tpu.vector_store %arg14[%c0_19, %c0_20], %55 {strides = array<i32>} : memref<10x64xf32, #tpu.memory_space<vmem>>, vector<5x64xf32>,
    %57 = vector.extract_strided_slice %25 {offsets = [5, 0], sizes = [5, 64], strides = [1, 1]} : vector<10x64xf32> to vector<5x64xf32>
    %58 = vector.extract_strided_slice %26 {offsets = [0, 0], sizes = [5, 64], strides = [1, 1]} : vector<10x64xf32> to vector<5x64xf32>
    %59 = arith.mulf %57, %58 : vector<5x64xf32>
    %cst_21 = arith.constant dense<0.000000e+00> : vector<5x64xf32>
    %60 = tpu.matmul %59, %28, %cst_21 {dimension_numbers = #tpu.dot_dimension_numbers<[1], [0], [0], [1], [0, 0, 1, 1], [], []>} : vector<5x64xf32>, vector<64x64xf32>, vector<5x64xf32> -> vector<5x64xf32>
    %cst_22 = arith.constant 2.500000e-01 : f32
    %61 = vector.broadcast %cst_22 : f32 to vector<5x64xf32>
    %62 = arith.mulf %60, %61 : vector<5x64xf32>
    %63 = vector.extract_strided_slice %26 {offsets = [5, 0], sizes = [5, 64], strides = [1, 1]} : vector<10x64xf32> to vector<5x64xf32>
    %64 = arith.mulf %57, %63 : vector<5x64xf32>
    %cst_23 = arith.constant dense<0.000000e+00> : vector<5x64xf32>
    %65 = tpu.matmul %64, %28, %cst_23 {dimension_numbers = #tpu.dot_dimension_numbers<[1], [0], [0], [1], [0, 0, 1, 1], [], []>} : vector<5x64xf32>, vector<64x64xf32>, vector<5x64xf32> -> vector<5x64xf32>
    %cst_24 = arith.constant 2.500000e-01 : f32
    %66 = vector.broadcast %cst_24 : f32 to vector<5x64xf32>
    %67 = arith.mulf %65, %66 : vector<5x64xf32>
    %68 = arith.maximumf %62, %67 : vector<5x64xf32>
    %69 = arith.subf %62, %68 : vector<5x64xf32>
    %70 = math.exp %69 : vector<5x64xf32>
    %71 = arith.subf %67, %68 : vector<5x64xf32>
    %72 = math.exp %71 : vector<5x64xf32>
    %73 = arith.addf %70, %72 : vector<5x64xf32>
    %74 = tpu.reciprocal %73 {approx = true} : vector<5x64xf32> -> vector<5x64xf32>
    %cst_25 = arith.constant 0.000000e+00 : f32
    %75 = vector.broadcast %cst_25 : f32 to vector<5x64xf32>
    %76 = arith.mulf %70, %74 : vector<5x64xf32>
    %77 = vector.extract_strided_slice %27 {offsets = [0, 0], sizes = [5, 64], strides = [1, 1]} : vector<10x64xf32> to vector<5x64xf32>
    %78 = arith.mulf %76, %77 : vector<5x64xf32>
    %79 = arith.addf %75, %78 : vector<5x64xf32>
    %80 = arith.mulf %72, %74 : vector<5x64xf32>
    %81 = vector.extract_strided_slice %27 {offsets = [5, 0], sizes = [5, 64], strides = [1, 1]} : vector<10x64xf32> to vector<5x64xf32>
    %82 = arith.mulf %80, %81 : vector<5x64xf32>
    %83 = arith.addf %79, %82 : vector<5x64xf32>
    %c5 = arith.constant 5 : index
    %c0_26 = arith.constant 0 : index
    %84 = vector.load %arg14[%c5, %c0_26] : memref<10x64xf32, #tpu.memory_space<vmem>>, vector<5x64xf32>
    tpu.vector_store %arg14[%c5, %c0_26], %83 {strides = array<i32>} : memref<10x64xf32, #tpu.memory_space<vmem>>, vector<5x64xf32>,
    %c0_27 = arith.constant 0 : index
    %c0_28 = arith.constant 0 : index
    %85 = vector.load %arg14[%c0_27, %c0_28] : memref<10x64xf32, #tpu.memory_space<vmem>>, vector<10x64xf32>
    %c0_29 = arith.constant 0 : index
    %c0_30 = arith.constant 0 : index
    %86 = vector.load %arg6[%c0_29, %c0_30] : memref<64x64xf32, #tpu.memory_space<vmem>>, vector<64x64xf32>
    %cst_31 = arith.constant dense<0.000000e+00> : vector<10x64xf32>
    %87 = tpu.matmul %85, %86, %cst_31 {dimension_numbers = #tpu.dot_dimension_numbers<[1], [0], [0], [1], [0, 0, 1, 1], [], []>} : vector<10x64xf32>, vector<64x64xf32>, vector<10x64xf32> -> vector<10x64xf32>
    %88 = arith.addf %0, %87 : vector<10x64xf32>
    %c0_32 = arith.constant 0 : index
    %c0_33 = arith.constant 0 : index
    %89 = vector.load %arg7[%c0_32, %c0_33] : memref<1x64xf32, #tpu.memory_space<vmem>>, vector<1x64xf32>
    %c0_34 = arith.constant 0 : index
    %c0_35 = arith.constant 0 : index
    %90 = vector.load %arg8[%c0_34, %c0_35] : memref<1x64xf32, #tpu.memory_space<vmem>>, vector<1x64xf32>
    %cst_36 = arith.constant dense<0.000000e+00> : vector<10xf32>
    %91 = vector.multi_reduction <add>, %88, %cst_36 [1] : vector<10x64xf32> to vector<10xf32>
    %92 = vector.shape_cast %91 : vector<10xf32> to vector<10x1xf32>
    %cst_37 = arith.constant 6.400000e+01 : f32
    %93 = vector.broadcast %cst_37 : f32 to vector<10x1xf32>
    %94 = arith.divf %92, %93 : vector<10x1xf32>
    %95 = vector.broadcast %94 : vector<10x1xf32> to vector<10x64xf32>
    %96 = arith.subf %88, %95 : vector<10x64xf32>
    %97 = arith.mulf %96, %96 : vector<10x64xf32>
    %cst_38 = arith.constant dense<0.000000e+00> : vector<10xf32>
    %98 = vector.multi_reduction <add>, %97, %cst_38 [1] : vector<10x64xf32> to vector<10xf32>
    %99 = vector.shape_cast %98 : vector<10xf32> to vector<10x1xf32>
    %cst_39 = arith.constant 6.400000e+01 : f32
    %100 = vector.broadcast %cst_39 : f32 to vector<10x1xf32>
    %101 = arith.divf %99, %100 : vector<10x1xf32>
    %cst_40 = arith.constant 9.99999974E-6 : f32
    %102 = vector.broadcast %cst_40 : f32 to vector<10x1xf32>
    %103 = arith.addf %101, %102 : vector<10x1xf32>
    %104 = math.rsqrt %103 : vector<10x1xf32>
    %105 = vector.broadcast %104 : vector<10x1xf32> to vector<10x64xf32>
    %106 = arith.mulf %96, %105 : vector<10x64xf32>
    %107 = vector.broadcast %89 : vector<1x64xf32> to vector<10x64xf32>
    %108 = arith.mulf %106, %107 : vector<10x64xf32>
    %109 = vector.broadcast %90 : vector<1x64xf32> to vector<10x64xf32>
    %110 = arith.addf %108, %109 : vector<10x64xf32>
    %c0_41 = arith.constant 0 : index
    %c0_42 = arith.constant 0 : index
    %111 = vector.load %arg9[%c0_41, %c0_42] : memref<64x256xf32, #tpu.memory_space<vmem>>, vector<64x256xf32>
    %cst_43 = arith.constant dense<0.000000e+00> : vector<10x256xf32>
    %112 = tpu.matmul %110, %111, %cst_43 {dimension_numbers = #tpu.dot_dimension_numbers<[1], [0], [0], [1], [0, 0, 1, 1], [], []>} : vector<10x64xf32>, vector<64x256xf32>, vector<10x256xf32> -> vector<10x256xf32>
    %c0_44 = arith.constant 0 : index
    %c0_45 = arith.constant 0 : index
    %113 = vector.load %arg10[%c0_44, %c0_45] : memref<1x256xf32, #tpu.memory_space<vmem>>, vector<1x256xf32>
    %114 = vector.broadcast %113 : vector<1x256xf32> to vector<10x256xf32>
    %115 = arith.addf %112, %114 : vector<10x256xf32>
    %cst_46 = arith.constant 5.000000e-01 : f32
    %116 = vector.broadcast %cst_46 : f32 to vector<10x256xf32>
    %117 = arith.mulf %116, %115 : vector<10x256xf32>
    %cst_47 = arith.constant 0.707106769 : f32
    %118 = vector.broadcast %cst_47 : f32 to vector<10x256xf32>
    %119 = arith.mulf %115, %118 : vector<10x256xf32>
    %cst_48 = arith.constant 0.000000e+00 : f32
    %120 = vector.broadcast %cst_48 : f32 to vector<10x256xf32>
    %121 = arith.cmpf olt, %119, %120 : vector<10x256xf32>
    %cst_49 = arith.constant -1.000000e+00 : f32
    %cst_50 = arith.constant 1.000000e+00 : f32
    %122 = vector.broadcast %cst_49 : f32 to vector<10x256xf32>
    %123 = vector.broadcast %cst_50 : f32 to vector<10x256xf32>
    %124 = arith.select %121, %122, %123 : vector<10x256xi1>, vector<10x256xf32>
    %125 = math.absf %119 : vector<10x256xf32>
    %cst_51 = arith.constant 0.327591091 : f32
    %126 = vector.broadcast %cst_51 : f32 to vector<10x256xf32>
    %127 = arith.mulf %126, %125 : vector<10x256xf32>
    %cst_52 = arith.constant 1.000000e+00 : f32
    %128 = vector.broadcast %cst_52 : f32 to vector<10x256xf32>
    %129 = arith.addf %128, %127 : vector<10x256xf32>
    %cst_53 = arith.constant 1.000000e+00 : f32
    %130 = vector.broadcast %cst_53 : f32 to vector<10x256xf32>
    %131 = arith.divf %130, %129 : vector<10x256xf32>
    %cst_54 = arith.constant 1.06140542 : f32
    %132 = vector.broadcast %cst_54 : f32 to vector<10x256xf32>
    %133 = arith.mulf %132, %131 : vector<10x256xf32>
    %cst_55 = arith.constant -1.45315206 : f32
    %134 = vector.broadcast %cst_55 : f32 to vector<10x256xf32>
    %135 = arith.addf %133, %134 : vector<10x256xf32>
    %136 = arith.mulf %135, %131 : vector<10x256xf32>
    %cst_56 = arith.constant 1.42141378 : f32
    %137 = vector.broadcast %cst_56 : f32 to vector<10x256xf32>
    %138 = arith.addf %136, %137 : vector<10x256xf32>
    %139 = arith.mulf %138, %131 : vector<10x256xf32>
    %cst_57 = arith.constant -0.284496725 : f32
    %140 = vector.broadcast %cst_57 : f32 to vector<10x256xf32>
    %141 = arith.addf %139, %140 : vector<10x256xf32>
    %142 = arith.mulf %141, %131 : vector<10x256xf32>
    %cst_58 = arith.constant 0.254829586 : f32
    %143 = vector.broadcast %cst_58 : f32 to vector<10x256xf32>
    %144 = arith.addf %142, %143 : vector<10x256xf32>
    %145 = arith.mulf %144, %131 : vector<10x256xf32>
    %cst_59 = arith.constant 0.000000e+00 : f32
    %146 = vector.broadcast %cst_59 : f32 to vector<10x256xf32>
    %147 = arith.subf %146, %125 : vector<10x256xf32>
    %148 = arith.mulf %147, %125 : vector<10x256xf32>
    %149 = math.exp %148 : vector<10x256xf32>
    %150 = arith.mulf %145, %149 : vector<10x256xf32>
    %cst_60 = arith.constant 1.000000e+00 : f32
    %151 = vector.broadcast %cst_60 : f32 to vector<10x256xf32>
    %152 = arith.subf %151, %150 : vector<10x256xf32>
    %153 = arith.mulf %124, %152 : vector<10x256xf32>
    %cst_61 = arith.constant 1.000000e+00 : f32
    %154 = vector.broadcast %cst_61 : f32 to vector<10x256xf32>
    %155 = arith.addf %154, %153 : vector<10x256xf32>
    %156 = arith.mulf %117, %155 : vector<10x256xf32>
    %c0_62 = arith.constant 0 : index
    %c0_63 = arith.constant 0 : index
    %157 = vector.load %arg11[%c0_62, %c0_63] : memref<256x64xf32, #tpu.memory_space<vmem>>, vector<256x64xf32>
    %cst_64 = arith.constant dense<0.000000e+00> : vector<10x64xf32>
    %158 = tpu.matmul %156, %157, %cst_64 {dimension_numbers = #tpu.dot_dimension_numbers<[1], [0], [0], [1], [0, 0, 1, 1], [], []>} : vector<10x256xf32>, vector<256x64xf32>, vector<10x64xf32> -> vector<10x64xf32>
    %c0_65 = arith.constant 0 : index
    %c0_66 = arith.constant 0 : index
    %159 = vector.load %arg12[%c0_65, %c0_66] : memref<1x64xf32, #tpu.memory_space<vmem>>, vector<1x64xf32>
    %160 = vector.broadcast %159 : vector<1x64xf32> to vector<10x64xf32>
    %161 = arith.addf %158, %160 : vector<10x64xf32>
    %162 = arith.addf %88, %161 : vector<10x64xf32>
    %c0_67 = arith.constant 0 : index
    %c0_68 = arith.constant 0 : index
    %163 = vector.load %arg13[%c0_67, %c0_68] : memref<10x64xf32, #tpu.memory_space<vmem>>, vector<10x64xf32>
    tpu.vector_store %arg13[%c0_67, %c0_68], %162 {strides = array<i32>} : memref<10x64xf32, #tpu.memory_space<vmem>>, vector<10x64xf32>,
    return
  }
  func.func @transform_0(%arg0: i32) -> (i32, i32) {
    %c0_i32 = arith.constant 0 : i32
    %c0_i32_0 = arith.constant 0 : i32
    %c0_i32_1 = arith.constant 0 : i32
    return %c0_i32, %c0_i32_0 : i32, i32
  }
  func.func @transform_1(%arg0: i32) -> (i32, i32) {
    %c0_i32 = arith.constant 0 : i32
    %c0_i32_0 = arith.constant 0 : i32
    %c0_i32_1 = arith.constant 0 : i32
    return %c0_i32, %c0_i32_0 : i32, i32
  }
  func.func @transform_2(%arg0: i32) -> (i32, i32) {
    %c0_i32 = arith.constant 0 : i32
    %c0_i32_0 = arith.constant 0 : i32
    %c0_i32_1 = arith.constant 0 : i32
    return %c0_i32, %c0_i32_0 : i32, i32
  }
  func.func @transform_3(%arg0: i32) -> (i32, i32) {
    %c0_i32 = arith.constant 0 : i32
    %c0_i32_0 = arith.constant 0 : i32
    %c0_i32_1 = arith.constant 0 : i32
    return %c0_i32, %c0_i32_0 : i32, i32
  }
  func.func @transform_4(%arg0: i32) -> (i32, i32) {
    %c0_i32 = arith.constant 0 : i32
    %c0_i32_0 = arith.constant 0 : i32
    %c0_i32_1 = arith.constant 0 : i32
    return %c0_i32, %c0_i32_0 : i32, i32
  }
  func.func @transform_5(%arg0: i32) -> (i32, i32) {
    %c0_i32 = arith.constant 0 : i32
    %c0_i32_0 = arith.constant 0 : i32
    %c0_i32_1 = arith.constant 0 : i32
    return %c0_i32, %c0_i32_0 : i32, i32
  }
  func.func @transform_6(%arg0: i32) -> (i32, i32) {
    %c0_i32 = arith.constant 0 : i32
    %c0_i32_0 = arith.constant 0 : i32
    %c0_i32_1 = arith.constant 0 : i32
    return %c0_i32, %c0_i32_0 : i32, i32
  }
  func.func @transform_7(%arg0: i32) -> (i32, i32) {
    %c0_i32 = arith.constant 0 : i32
    %c0_i32_0 = arith.constant 0 : i32
    %c0_i32_1 = arith.constant 0 : i32
    return %c0_i32, %c0_i32_0 : i32, i32
  }
  func.func @transform_8(%arg0: i32) -> (i32, i32) {
    %c0_i32 = arith.constant 0 : i32
    %c0_i32_0 = arith.constant 0 : i32
    %c0_i32_1 = arith.constant 0 : i32
    return %c0_i32, %c0_i32_0 : i32, i32
  }
  func.func @transform_9(%arg0: i32) -> (i32, i32) {
    %c0_i32 = arith.constant 0 : i32
    %c0_i32_0 = arith.constant 0 : i32
    %c0_i32_1 = arith.constant 0 : i32
    return %c0_i32, %c0_i32_0 : i32, i32
  }
  func.func @transform_10(%arg0: i32) -> (i32, i32) {
    %c0_i32 = arith.constant 0 : i32
    %c0_i32_0 = arith.constant 0 : i32
    %c0_i32_1 = arith.constant 0 : i32
    return %c0_i32, %c0_i32_0 : i32, i32
  }
  func.func @transform_11(%arg0: i32) -> (i32, i32) {
    %c0_i32 = arith.constant 0 : i32
    %c0_i32_0 = arith.constant 0 : i32
    %c0_i32_1 = arith.constant 0 : i32
    return %c0_i32, %c0_i32_0 : i32, i32
  }
  func.func @transform_12(%arg0: i32) -> (i32, i32) {
    %c0_i32 = arith.constant 0 : i32
    %c0_i32_0 = arith.constant 0 : i32
    %c0_i32_1 = arith.constant 0 : i32
    return %c0_i32, %c0_i32_0 : i32, i32
  }
}

module attributes {stable_mosaic.version = 11 : i64} {
  func.func @_head_kernel(%arg0: i32, %arg1: memref<2x64xf32, #tpu.memory_space<vmem>>, %arg2: memref<1x64xf32, #tpu.memory_space<vmem>>, %arg3: memref<1x64xf32, #tpu.memory_space<vmem>>, %arg4: memref<64x1xf32, #tpu.memory_space<vmem>>, %arg5: memref<1x1xf32, #tpu.memory_space<vmem>>, %arg6: memref<2x1xf32, #tpu.memory_space<vmem>>) attributes {dimension_semantics = [#tpu.dimension_semantics<arbitrary>], iteration_bounds = array<i64: 1>, scalar_prefetch = 0 : i64, scratch_operands = 0 : i64, tpu.core_type = #tpu.core_type<tc>, window_params = [{pipeline_mode = #tpu.pipeline_mode<synchronous>, transform_indices = @transform_0, window_bounds = array<i64: 2, 64>}, {pipeline_mode = #tpu.pipeline_mode<synchronous>, transform_indices = @transform_1, window_bounds = array<i64: 1, 64>}, {pipeline_mode = #tpu.pipeline_mode<synchronous>, transform_indices = @transform_2, window_bounds = array<i64: 1, 64>}, {pipeline_mode = #tpu.pipeline_mode<synchronous>, transform_indices = @transform_3, window_bounds = array<i64: 64, 1>}, {pipeline_mode = #tpu.pipeline_mode<synchronous>, transform_indices = @transform_4, window_bounds = array<i64: 1, 1>}, {pipeline_mode = #tpu.pipeline_mode<synchronous>, transform_indices = @transform_5, window_bounds = array<i64: 2, 1>}]} {
    %c0 = arith.constant 0 : index
    %c0_0 = arith.constant 0 : index
    %0 = vector.load %arg1[%c0, %c0_0] : memref<2x64xf32, #tpu.memory_space<vmem>>, vector<2x64xf32>
    %c0_1 = arith.constant 0 : index
    %c0_2 = arith.constant 0 : index
    %1 = vector.load %arg2[%c0_1, %c0_2] : memref<1x64xf32, #tpu.memory_space<vmem>>, vector<1x64xf32>
    %c0_3 = arith.constant 0 : index
    %c0_4 = arith.constant 0 : index
    %2 = vector.load %arg3[%c0_3, %c0_4] : memref<1x64xf32, #tpu.memory_space<vmem>>, vector<1x64xf32>
    %cst = arith.constant dense<0.000000e+00> : vector<2xf32>
    %3 = vector.multi_reduction <add>, %0, %cst [1] : vector<2x64xf32> to vector<2xf32>
    %4 = vector.shape_cast %3 : vector<2xf32> to vector<2x1xf32>
    %cst_5 = arith.constant 6.400000e+01 : f32
    %5 = vector.broadcast %cst_5 : f32 to vector<2x1xf32>
    %6 = arith.divf %4, %5 : vector<2x1xf32>
    %7 = vector.broadcast %6 : vector<2x1xf32> to vector<2x64xf32>
    %8 = arith.subf %0, %7 : vector<2x64xf32>
    %9 = arith.mulf %8, %8 : vector<2x64xf32>
    %cst_6 = arith.constant dense<0.000000e+00> : vector<2xf32>
    %10 = vector.multi_reduction <add>, %9, %cst_6 [1] : vector<2x64xf32> to vector<2xf32>
    %11 = vector.shape_cast %10 : vector<2xf32> to vector<2x1xf32>
    %cst_7 = arith.constant 6.400000e+01 : f32
    %12 = vector.broadcast %cst_7 : f32 to vector<2x1xf32>
    %13 = arith.divf %11, %12 : vector<2x1xf32>
    %cst_8 = arith.constant 9.99999974E-6 : f32
    %14 = vector.broadcast %cst_8 : f32 to vector<2x1xf32>
    %15 = arith.addf %13, %14 : vector<2x1xf32>
    %16 = math.rsqrt %15 : vector<2x1xf32>
    %17 = vector.broadcast %16 : vector<2x1xf32> to vector<2x64xf32>
    %18 = arith.mulf %8, %17 : vector<2x64xf32>
    %19 = vector.broadcast %1 : vector<1x64xf32> to vector<2x64xf32>
    %20 = arith.mulf %18, %19 : vector<2x64xf32>
    %21 = vector.broadcast %2 : vector<1x64xf32> to vector<2x64xf32>
    %22 = arith.addf %20, %21 : vector<2x64xf32>
    %c0_9 = arith.constant 0 : index
    %c0_10 = arith.constant 0 : index
    %23 = vector.load %arg4[%c0_9, %c0_10] : memref<64x1xf32, #tpu.memory_space<vmem>>, vector<64x1xf32>
    %cst_11 = arith.constant dense<0.000000e+00> : vector<2x1xf32>
    %24 = tpu.matmul %22, %23, %cst_11 {dimension_numbers = #tpu.dot_dimension_numbers<[1], [0], [0], [1], [0, 0, 1, 1], [], []>} : vector<2x64xf32>, vector<64x1xf32>, vector<2x1xf32> -> vector<2x1xf32>
    %c0_12 = arith.constant 0 : index
    %c0_13 = arith.constant 0 : index
    %25 = vector.load %arg5[%c0_12, %c0_13] : memref<1x1xf32, #tpu.memory_space<vmem>>, vector<1x1xf32>
    %26 = vector.broadcast %25 : vector<1x1xf32> to vector<2x1xf32>
    %27 = arith.addf %24, %26 : vector<2x1xf32>
    %c0_14 = arith.constant 0 : index
    %c0_15 = arith.constant 0 : index
    %28 = vector.load %arg6[%c0_14, %c0_15] : memref<2x1xf32, #tpu.memory_space<vmem>>, vector<2x1xf32>
    tpu.vector_store %arg6[%c0_14, %c0_15], %27 {strides = array<i32>} : memref<2x1xf32, #tpu.memory_space<vmem>>, vector<2x1xf32>,
    return
  }
  func.func @transform_0(%arg0: i32) -> (i32, i32) {
    %c0_i32 = arith.constant 0 : i32
    %c0_i32_0 = arith.constant 0 : i32
    %c0_i32_1 = arith.constant 0 : i32
    return %c0_i32, %c0_i32_0 : i32, i32
  }
  func.func @transform_1(%arg0: i32) -> (i32, i32) {
    %c0_i32 = arith.constant 0 : i32
    %c0_i32_0 = arith.constant 0 : i32
    %c0_i32_1 = arith.constant 0 : i32
    return %c0_i32, %c0_i32_0 : i32, i32
  }
  func.func @transform_2(%arg0: i32) -> (i32, i32) {
    %c0_i32 = arith.constant 0 : i32
    %c0_i32_0 = arith.constant 0 : i32
    %c0_i32_1 = arith.constant 0 : i32
    return %c0_i32, %c0_i32_0 : i32, i32
  }
  func.func @transform_3(%arg0: i32) -> (i32, i32) {
    %c0_i32 = arith.constant 0 : i32
    %c0_i32_0 = arith.constant 0 : i32
    %c0_i32_1 = arith.constant 0 : i32
    return %c0_i32, %c0_i32_0 : i32, i32
  }
  func.func @transform_4(%arg0: i32) -> (i32, i32) {
    %c0_i32 = arith.constant 0 : i32
    %c0_i32_0 = arith.constant 0 : i32
    %c0_i32_1 = arith.constant 0 : i32
    return %c0_i32, %c0_i32_0 : i32, i32
  }
  func.func @transform_5(%arg0: i32) -> (i32, i32) {
    %c0_i32 = arith.constant 0 : i32
    %c0_i32_0 = arith.constant 0 : i32
    %c0_i32_1 = arith.constant 0 : i32
    return %c0_i32, %c0_i32_0 : i32, i32
  }
}

</mosaic_0001>

<llo_original>
// kernel: maxvit_forward.7
$region0: #{maxvit_forward.7}
  #allocation0 [shape = 'u32[]', space=smem, size = 0x4, offset = 0x4, fixed_abs, tag = 'smem constant byte address 0x4 - core index']
  #allocation1 [shape = 'u32[144,128]{1,0:T(1,128)}', space=vmem, size = 0x12000, scoped, tag = 'internal scratch']
  #allocation2 [shape = 'f32[1,1]{1,0:T(1,128)S(1)}', space=vmem, size = 0x200, scoped, tag = 'scoped memory for maxvit_forward.7']
  %s0 = inlined_call_operand.vmem [shape: f32[2,64], index: 0, kind: input, shape index: {}]
  %s1 = inlined_call_operand.vmem [shape: f32[1,64], index: 1, kind: input, shape index: {}]
  %s2 = inlined_call_operand.vmem [shape: f32[1,64], index: 2, kind: input, shape index: {}]
  %s3 = inlined_call_operand.vmem [shape: f32[64,1], index: 3, kind: input, shape index: {}]
  %s4 = inlined_call_operand.<no memory space> [shape: f32[1,1], index: 4, kind: input, shape index: {}]
  %s5 = inlined_call_operand.vmem [shape: f32[2,1], index: 5, kind: output, shape index: {}]
  %s6 = sld [smem:[#allocation0]]
  $region30: #{maxvit_forward.7} parent=0
    _
  %s8 = ssub.s32 1, %s6
  %s9 = scalar_select 0, %s8, %s6
  %v10 = vstv %s4
  %11 = vst [vmem:[#allocation2] sm:$0x1] %v10
  // Predicated region
  $region2: #{maxvit_forward.7} parent=0 // pred_check
    _
  $region3: #{maxvit_forward.7} parent=0 // pred_check_branch
    %13 = sbr.rel (0) target = $region5
  $region4: #{maxvit_forward.7} parent=0 // pred_region
    _
  $region5: #{maxvit_forward.7} parent=0 // pred_fallthru
    _
  // Predicated region
  $region6: #{maxvit_forward.7} parent=0 // pred_check
    _
  $region7: #{maxvit_forward.7} parent=0 // pred_check_branch
    %15 = sbr.rel (0) target = $region9
  $region8: #{maxvit_forward.7} parent=0 // pred_region
    _
  $region9: #{maxvit_forward.7} parent=0 // pred_fallthru
    _
  // Predicated region
  $region10: #{maxvit_forward.7} parent=0 // pred_check
    _
  $region11: #{maxvit_forward.7} parent=0 // pred_check_branch
    %17 = sbr.rel (0) target = $region13
  $region12: #{maxvit_forward.7} parent=0 // pred_region
    _
  $region13: #{maxvit_forward.7} parent=0 // pred_fallthru
    _
  // Predicated region
  $region14: #{maxvit_forward.7} parent=0 // pred_check
    _
  $region15: #{maxvit_forward.7} parent=0 // pred_check_branch
    %19 = sbr.rel (0) target = $region17
  $region16: #{maxvit_forward.7} parent=0 // pred_region
    _
  $region17: #{maxvit_forward.7} parent=0 // pred_fallthru
    _
  // Predicated region
  $region18: #{maxvit_forward.7} parent=0 // pred_check
    _
  $region19: #{maxvit_forward.7} parent=0 // pred_check_branch
    %21 = sbr.rel (0) target = $region21
  $region20: #{maxvit_forward.7} parent=0 // pred_region
    _
  $region21: #{maxvit_forward.7} parent=0 // pred_fallthru
    _
  %v22 = vld [vmem:[%s0] sm:$0x3]
  %v23 = vld [vmem:[%s1] sm:$0x1]
  %v24 = vld [vmem:[%s2] sm:$0x1]
  %vm25 = vcmask 517120
  %v26 = vsel %vm25, %v22, 0.0
  %27 = vadd.xlane.f32.xlu0 %v26
  %v28 = vpop.xlane.xlu0 %27
  %v29 = vrcp.pop 64.0
  %v30 = vmul.f32 %v28, %v29
  %v31 = vsub.f32 %v22, %v30
  %v32 = vmul.f32 %v31, %v31
  %v33 = vsel %vm25, %v32, 0.0
  %34 = vadd.xlane.f32.xlu0 %v33
  %v35 = vpop.xlane.xlu0 %34
  %v36 = vmul.f32 %v35, %v29
  %v37 = vadd.f32 %v36, 1e-05
  %v38 = vrsqrt.pop %v37
  %v39 = vmul.f32 %v31, %v38
  %v41 = vlaneseq
  %v42 = vshrl.u32 %v41, 7
  %v43 = vsub.s32 0, %v42
  %v44 = vrot.slane %v23, %v43
  %v46 = vmul.f32 %v39, %v44
  %v48 = vlaneseq
  %v49 = vshrl.u32 %v48, 7
  %v50 = vsub.s32 0, %v49
  %v51 = vrot.slane %v24, %v50
  %v53 = vadd.f32 %v46, %v51
  %v54 = vld [vmem:[%s3] sm:$0xff]
  %v55 = vld [vmem:[%s3 + $0x8] sm:$0xff]
  %v56 = vld [vmem:[%s3 + $0x10] sm:$0xff]
  %v57 = vld [vmem:[%s3 + $0x18] sm:$0xff]
  %v58 = vld [vmem:[%s3 + $0x20] sm:$0xff]
  %v59 = vld [vmem:[%s3 + $0x28] sm:$0xff]
  %v60 = vld [vmem:[%s3 + $0x30] sm:$0xff]
  %v61 = vld [vmem:[%s3 + $0x38] sm:$0xff]
  %v62 = vld [vmem:[#allocation2] sm:$0x1]
  %v64 = vlaneseq
  %v65 = vshrl.u32 %v64, 7
  %v66 = vsub.s32 0, %v65
  %v67 = vrot.slane %v62, %v66
  %vm69 = vcmask 523264
  %v71 = vsel %vm69, %v53, 0
  %73 = vmatprep.subr.mxu0 0.0
  %74 = vmatpush1.msra.mxu0 %v54
  %75 = vmatprep.subr.mxu0 0.0
  %76 = vmatpush1.msra.mxu0 %v55
  %77 = vmatprep.subr.mxu0 0.0
  %78 = vmatpush1.msra.mxu0 %v56
  %79 = vmatprep.subr.mxu0 0.0
  %80 = vmatpush1.msra.mxu0 %v57
  %81 = vmatprep.subr.mxu0 0.0
  %82 = vmatpush1.msra.mxu0 %v58
  %83 = vmatprep.subr.mxu0 0.0
  %84 = vmatpush1.msra.mxu0 %v59
  %85 = vmatprep.subr.mxu0 0.0
  %86 = vmatpush1.msra.mxu0 %v60
  %87 = vmatprep.subr.mxu0 0.0
  %88 = vmatpush1.msra.mxu0 %v61
  %89 = vmatprep.subr.mxu0 0.0
  %90 = vmatpush1.msra.mxu0 0.0
  %91 = vmatprep.subr.mxu0 0.0
  %92 = vmatpush1.msra.mxu0 0.0
  %93 = vmatprep.subr.mxu0 0.0
  %94 = vmatpush1.msra.mxu0 0.0
  %95 = vmatprep.subr.mxu0 0.0
  %96 = vmatpush1.msra.mxu0 0.0
  %97 = vmatprep.subr.mxu0 0.0
  %98 = vmatpush1.msra.mxu0 0.0
  %99 = vmatprep.subr.mxu0 0.0
  %100 = vmatpush1.msra.mxu0 0.0
  %101 = vmatprep.subr.mxu0 0.0
  %102 = vmatpush1.msra.mxu0 0.0
  %103 = vmatprep.subr.mxu0 0.0
  %104 = vmatpush1.msra.mxu0 0.0
  %105 = vmatprep.subr.mxu0 0.0
  %106 = vmatpush1.msra.mxu0 0.0
  %107 = vmatprep.subr.mxu0 0.0
  %108 = vmatpush1.msra.mxu0 0.0
  %109 = vmatprep.subr.mxu0 0.0
  %110 = vmatpush1.msra.mxu0 0.0
  %111 = vmatprep.subr.mxu0 0.0
  %112 = vmatpush1.msra.mxu0 0.0
  %113 = vmatprep.subr.mxu0 0.0
  %114 = vmatpush1.msra.mxu0 0.0
  %115 = vmatprep.subr.mxu0 0.0
  %116 = vmatpush1.msra.mxu0 0.0
  %117 = vmatprep.subr.mxu0 0.0
  %118 = vmatpush1.msra.mxu0 0.0
  %119 = vmatprep.subr.mxu0 0.0
  %120 = vmatpush1.msra.mxu0 0.0
  %121 = vmatprep.subr.mxu0 0.0
  %122 = vmatpush1.msra.mxu0 0.0
  %123 = vmatprep.subr.mxu0 0.0
  %124 = vmatpush1.msra.mxu0 0.0
  %125 = vmatprep.subr.mxu0 0.0
  %126 = vmatpush1.msra.mxu0 0.0
  %127 = vmatprep.subr.mxu0 0.0
  %128 = vmatpush1.msra.mxu0 0.0
  %129 = vmatprep.subr.mxu0 0.0
  %130 = vmatpush1.msra.mxu0 0.0
  %131 = vmatprep.subr.mxu0 0.0
  %132 = vmatpush1.msra.mxu0 0.0
  %133 = vmatprep.subr.mxu0 0.0
  %134 = vmatpush1.msra.mxu0 0.0
  %135 = vmatprep.subr.mxu0 0.0
  %136 = vmatpush1.msra.mxu0 0.0
  %137 = vmatprep.mubr.f32.mxu0 0.0
  %138 = vmatmul.mubr.f32.gmra.mrb[0].mxu0 %v71
  %v139 = vpop.f32.mrb[0].mxu0
  %v140 = vadd.f32 %v67, %v139
  %v141 = vpop.f32.mrb[0].mxu0
  %142 = vdwg.mxu0
  %vm143 = vcmask 1024
  %144 = vst.msk [vmem:[%s5] sm:$0x3] %vm143, %v140
  // Predicated region
  $region22: #{maxvit_forward.7} parent=0 // pred_check
    _
  $region23: #{maxvit_forward.7} parent=0 // pred_check_branch
    %146 = sbr.rel (0) target = $region25
  $region24: #{maxvit_forward.7} parent=0 // pred_region
    _
  $region25: #{maxvit_forward.7} parent=0 // pred_fallthru
    _
  // Predicated region
  $region26: #{maxvit_forward.7} parent=0 // pred_check
    _
  $region27: #{maxvit_forward.7} parent=0 // pred_check_branch
    %148 = sbr.rel (0) target = $region29
  $region28: #{maxvit_forward.7} parent=0 // pred_region
    _
  $region29: #{maxvit_forward.7} parent=0 // pred_fallthru
    _

// kernel: maxvit_forward.4
$region0: #{maxvit_forward.4}
  #allocation0 [shape = 'u32[]', space=smem, size = 0x4, offset = 0x4, fixed_abs, tag = 'smem constant byte address 0x4 - core index']
  #allocation1 [shape = 'u32[144,128]{1,0:T(1,128)}', space=vmem, size = 0x12000, scoped, tag = 'internal scratch']
  %s0 = inlined_call_operand.vmem [shape: f32[8,64], index: 0, kind: input, shape index: {}]
  %s1 = inlined_call_operand.vmem [shape: f32[64,64], index: 1, kind: input, shape index: {}]
  %s2 = inlined_call_operand.vmem [shape: f32[1,64], index: 2, kind: input, shape index: {}]
  %s3 = inlined_call_operand.vmem [shape: f32[1,64], index: 3, kind: input, shape index: {}]
  %s4 = inlined_call_operand.vmem [shape: f32[5,64], index: 4, kind: input, shape index: {}]
  %s5 = inlined_call_operand.vmem [shape: f32[10,64], index: 5, kind: output, shape index: {}]
  %s6 = sld [smem:[#allocation0]]
  $region30: #{maxvit_forward.4} parent=0
    _
  %s8 = ssub.s32 1, %s6
  %s9 = scalar_select 0, %s8, %s6
  // Predicated region
  $region2: #{maxvit_forward.4} parent=0 // pred_check
    _
  $region3: #{maxvit_forward.4} parent=0 // pred_check_branch
    %11 = sbr.rel (0) target = $region5
  $region4: #{maxvit_forward.4} parent=0 // pred_region
    _
  $region5: #{maxvit_forward.4} parent=0 // pred_fallthru
    _
  // Predicated region
  $region6: #{maxvit_forward.4} parent=0 // pred_check
    _
  $region7: #{maxvit_forward.4} parent=0 // pred_check_branch
    %13 = sbr.rel (0) target = $region9
  $region8: #{maxvit_forward.4} parent=0 // pred_region
    _
  $region9: #{maxvit_forward.4} parent=0 // pred_fallthru
    _
  // Predicated region
  $region10: #{maxvit_forward.4} parent=0 // pred_check
    _
  $region11: #{maxvit_forward.4} parent=0 // pred_check_branch
    %15 = sbr.rel (0) target = $region13
  $region12: #{maxvit_forward.4} parent=0 // pred_region
    _
  $region13: #{maxvit_forward.4} parent=0 // pred_fallthru
    _
  // Predicated region
  $region14: #{maxvit_forward.4} parent=0 // pred_check
    _
  $region15: #{maxvit_forward.4} parent=0 // pred_check_branch
    %17 = sbr.rel (0) target = $region17
  $region16: #{maxvit_forward.4} parent=0 // pred_region
    _
  $region17: #{maxvit_forward.4} parent=0 // pred_fallthru
    _
  // Predicated region
  $region18: #{maxvit_forward.4} parent=0 // pred_check
    _
  $region19: #{maxvit_forward.4} parent=0 // pred_check_branch
    %19 = sbr.rel (0) target = $region21
  $region20: #{maxvit_forward.4} parent=0 // pred_region
    _
  $region21: #{maxvit_forward.4} parent=0 // pred_fallthru
    _
  %v20 = vld [vmem:[%s0] sm:$0xff]
  %v21 = vld [vmem:[%s1] sm:$0xff]
  %v22 = vld [vmem:[%s1 + $0x8] sm:$0xff]
  %v23 = vld [vmem:[%s1 + $0x10] sm:$0xff]
  %v24 = vld [vmem:[%s1 + $0x18] sm:$0xff]
  %v25 = vld [vmem:[%s1 + $0x20] sm:$0xff]
  %v26 = vld [vmem:[%s1 + $0x28] sm:$0xff]
  %v27 = vld [vmem:[%s1 + $0x30] sm:$0xff]
  %v28 = vld [vmem:[%s1 + $0x38] sm:$0xff]
  %v29 = vld [vmem:[%s2] sm:$0x1]
  %v31 = vlaneseq
  %v32 = vshrl.u32 %v31, 7
  %v33 = vsub.s32 0, %v32
  %v34 = vrot.slane %v29, %v33
  %vm36 = vcmask 523264
  %v38 = vsel %vm36, %v20, 0
  %40 = vmatprep.subr.mxu0 0.0
  %41 = vmatpush1.msra.mxu0 %v21
  %42 = vmatprep.subr.mxu0 0.0
  %43 = vmatpush1.msra.mxu0 %v22
  %44 = vmatprep.subr.mxu0 0.0
  %45 = vmatpush1.msra.mxu0 %v23
  %46 = vmatprep.subr.mxu0 0.0
  %47 = vmatpush1.msra.mxu0 %v24
  %48 = vmatprep.subr.mxu0 0.0
  %49 = vmatpush1.msra.mxu0 %v25
  %50 = vmatprep.subr.mxu0 0.0
  %51 = vmatpush1.msra.mxu0 %v26
  %52 = vmatprep.subr.mxu0 0.0
  %53 = vmatpush1.msra.mxu0 %v27
  %54 = vmatprep.subr.mxu0 0.0
  %55 = vmatpush1.msra.mxu0 %v28
  %56 = vmatprep.subr.mxu0 0.0
  %57 = vmatpush1.msra.mxu0 0.0
  %58 = vmatprep.subr.mxu0 0.0
  %59 = vmatpush1.msra.mxu0 0.0
  %60 = vmatprep.subr.mxu0 0.0
  %61 = vmatpush1.msra.mxu0 0.0
  %62 = vmatprep.subr.mxu0 0.0
  %63 = vmatpush1.msra.mxu0 0.0
  %64 = vmatprep.subr.mxu0 0.0
  %65 = vmatpush1.msra.mxu0 0.0
  %66 = vmatprep.subr.mxu0 0.0
  %67 = vmatpush1.msra.mxu0 0.0
  %68 = vmatprep.subr.mxu0 0.0
  %69 = vmatpush1.msra.mxu0 0.0
  %70 = vmatprep.subr.mxu0 0.0
  %71 = vmatpush1.msra.mxu0 0.0
  %72 = vmatprep.subr.mxu0 0.0
  %73 = vmatpush1.msra.mxu0 0.0
  %74 = vmatprep.subr.mxu0 0.0
  %75 = vmatpush1.msra.mxu0 0.0
  %76 = vmatprep.subr.mxu0 0.0
  %77 = vmatpush1.msra.mxu0 0.0
  %78 = vmatprep.subr.mxu0 0.0
  %79 = vmatpush1.msra.mxu0 0.0
  %80 = vmatprep.subr.mxu0 0.0
  %81 = vmatpush1.msra.mxu0 0.0
  %82 = vmatprep.subr.mxu0 0.0
  %83 = vmatpush1.msra.mxu0 0.0
  %84 = vmatprep.subr.mxu0 0.0
  %85 = vmatpush1.msra.mxu0 0.0
  %86 = vmatprep.subr.mxu0 0.0
  %87 = vmatpush1.msra.mxu0 0.0
  %88 = vmatprep.subr.mxu0 0.0
  %89 = vmatpush1.msra.mxu0 0.0
  %90 = vmatprep.subr.mxu0 0.0
  %91 = vmatpush1.msra.mxu0 0.0
  %92 = vmatprep.subr.mxu0 0.0
  %93 = vmatpush1.msra.mxu0 0.0
  %94 = vmatprep.subr.mxu0 0.0
  %95 = vmatpush1.msra.mxu0 0.0
  %96 = vmatprep.subr.mxu0 0.0
  %97 = vmatpush1.msra.mxu0 0.0
  %98 = vmatprep.subr.mxu0 0.0
  %99 = vmatpush1.msra.mxu0 0.0
  %100 = vmatprep.subr.mxu0 0.0
  %101 = vmatpush1.msra.mxu0 0.0
  %102 = vmatprep.subr.mxu0 0.0
  %103 = vmatpush1.msra.mxu0 0.0
  %104 = vmatprep.mubr.f32.mxu0 0.0
  %105 = vmatmul.mubr.f32.gmra.mrb[0].mxu0 %v38
  %v106 = vpop.f32.mrb[0].mxu0
  %v107 = vadd.f32 %v34, %v106
  %v108 = vpop.f32.mrb[0].mxu0
  %109 = vdwg.mxu0
  %v110 = vld [vmem:[%s4] sm:$0x1f]
  %v111 = vld [vmem:[%s3] sm:$0x1]
  %v112 = vadd.f32 %v111, %v110
  %vm113 = vcmask 516096
  %114 = vst.msk [vmem:[%s5] sm:$0x1] %vm113, %v112
  %v116 = vrot.slane %v110, 1
  %v118 = vadd.f32 %v107, %v116
  %vm119 = vcmask 519168
  %120 = vst.msk [vmem:[%s5 + $0x1] sm:$0xf] %vm119, %v118
  %121 = vst.msk [vmem:[%s5 + $0x5] sm:$0x1] %vm113, %v112
  %v122 = vrot.slane %v110, 5
  %v124 = vadd.f32 %v107, %v122
  %vm125 = vcmask 523268
  %126 = vst.msk [vmem:[%s5 + $0x2] sm:$0xf0] %vm125, %v124
  // Predicated region
  $region22: #{maxvit_forward.4} parent=0 // pred_check
    _
  $region23: #{maxvit_forward.4} parent=0 // pred_check_branch
    %128 = sbr.rel (0) target = $region25
  $region24: #{maxvit_forward.4} parent=0 // pred_region
    _
  $region25: #{maxvit_forward.4} parent=0 // pred_fallthru
    _
  // Predicated region
  $region26: #{maxvit_forward.4} parent=0 // pred_check
    _
  $region27: #{maxvit_forward.4} parent=0 // pred_check_branch
    %130 = sbr.rel (0) target = $region29
  $region28: #{maxvit_forward.4} parent=0 // pred_region
    _
  $region29: #{maxvit_forward.4} parent=0 // pred_fallthru
    _

// kernel: maxvit_forward.5
$region0: #{maxvit_forward.5}
  #allocation0 [shape = 'u32[]', space=smem, size = 0x4, offset = 0x4, fixed_abs, tag = 'smem constant byte address 0x4 - core index']
  #allocation1 [shape = 'u32[144,128]{1,0:T(1,128)}', space=vmem, size = 0x12000, scoped, tag = 'internal scratch']
  #allocation2 [shape = 'f32[10,64]{1,0:T(8,128)}', space=vmem, size = 0x2000, scoped, tag = 'scratch operand']
  %s0 = inlined_call_operand.vmem [shape: f32[10,64], index: 0, kind: input, shape index: {}]
  %s1 = inlined_call_operand.vmem [shape: f32[64,64], index: 1, kind: input, shape index: {}]
  %s2 = inlined_call_operand.vmem [shape: f32[1,64], index: 2, kind: input, shape index: {}]
  %s3 = inlined_call_operand.vmem [shape: f32[1,64], index: 3, kind: input, shape index: {}]
  %s4 = inlined_call_operand.vmem [shape: f32[64,192], index: 4, kind: input, shape index: {}]
  %s5 = inlined_call_operand.vmem [shape: f32[64,64], index: 5, kind: input, shape index: {}]
  %s6 = inlined_call_operand.vmem [shape: f32[1,64], index: 6, kind: input, shape index: {}]
  %s7 = inlined_call_operand.vmem [shape: f32[1,64], index: 7, kind: input, shape index: {}]
  %s8 = inlined_call_operand.vmem [shape: f32[64,256], index: 8, kind: input, shape index: {}]
  %s9 = inlined_call_operand.vmem [shape: f32[1,256], index: 9, kind: input, shape index: {}]
  %s10 = inlined_call_operand.vmem [shape: f32[256,64], index: 10, kind: input, shape index: {}]
  %s11 = inlined_call_operand.vmem [shape: f32[1,64], index: 11, kind: input, shape index: {}]
  %s12 = inlined_call_operand.vmem [shape: f32[10,64], index: 12, kind: output, shape index: {}]
  %s13 = sld [smem:[#allocation0]]
  $region58: #{maxvit_forward.5} parent=0
    _
  %s15 = ssub.s32 1, %s13
  %s16 = scalar_select 0, %s15, %s13
  // Predicated region
  $region2: #{maxvit_forward.5} parent=0 // pred_check
    _
  $region3: #{maxvit_forward.5} parent=0 // pred_check_branch
    %18 = sbr.rel (0) target = $region5
  $region4: #{maxvit_forward.5} parent=0 // pred_region
    _
  $region5: #{maxvit_forward.5} parent=0 // pred_fallthru
    _
  // Predicated region
  $region6: #{maxvit_forward.5} parent=0 // pred_check
    _
  $region7: #{maxvit_forward.5} parent=0 // pred_check_branch
    %20 = sbr.rel (0) target = $region9
  $region8: #{maxvit_forward.5} parent=0 // pred_region
    _
  $region9: #{maxvit_forward.5} parent=0 // pred_fallthru
    _
  // Predicated region
  $region10: #{maxvit_forward.5} parent=0 // pred_check
    _
  $region11: #{maxvit_forward.5} parent=0 // pred_check_branch
    %22 = sbr.rel (0) target = $region13
  $region12: #{maxvit_forward.5} parent=0 // pred_region
    _
  $region13: #{maxvit_forward.5} parent=0 // pred_fallthru
    _
  // Predicated region
  $region14: #{maxvit_forward.5} parent=0 // pred_check
    _
  $region15: #{maxvit_forward.5} parent=0 // pred_check_branch
    %24 = sbr.rel (0) target = $region17
  $region16: #{maxvit_forward.5} parent=0 // pred_region
    _
  $region17: #{maxvit_forward.5} parent=0 // pred_fallthru
    _
  // Predicated region
  $region18: #{maxvit_forward.5} parent=0 // pred_check
    _
  $region19: #{maxvit_forward.5} parent=0 // pred_check_branch
    %26 = sbr.rel (0) target = $region21
  $region20: #{maxvit_forward.5} parent=0 // pred_region
    _
  $region21: #{maxvit_forward.5} parent=0 // pred_fallthru
    _
  // Predicated region
  $region22: #{maxvit_forward.5} parent=0 // pred_check
    _
  $region23: #{maxvit_forward.5} parent=0 // pred_check_branch
    %28 = sbr.rel (0) target = $region25
  $region24: #{maxvit_forward.5} parent=0 // pred_region
    _
  $region25: #{maxvit_forward.5} parent=0 // pred_fallthru
    _
  // Predicated region
  $region26: #{maxvit_forward.5} parent=0 // pred_check
    _
  $region27: #{maxvit_forward.5} parent=0 // pred_check_branch
    %30 = sbr.rel (0) target = $region29
  $region28: #{maxvit_forward.5} parent=0 // pred_region
    _
  $region29: #{maxvit_forward.5} parent=0 // pred_fallthru
    _
  // Predicated region
  $region30: #{maxvit_forward.5} parent=0 // pred_check
    _
  $region31: #{maxvit_forward.5} parent=0 // pred_check_branch
    %32 = sbr.rel (0) target = $region33
  $region32: #{maxvit_forward.5} parent=0 // pred_region
    _
  $region33: #{maxvit_forward.5} parent=0 // pred_fallthru
    _
  // Predicated region
  $region34: #{maxvit_forward.5} parent=0 // pred_check
    _
  $region35: #{maxvit_forward.5} parent=0 // pred_check_branch
    %34 = sbr.rel (0) target = $region37
  $region36: #{maxvit_forward.5} parent=0 // pred_region
    _
  $region37: #{maxvit_forward.5} parent=0 // pred_fallthru
    _
  // Predicated region
  $region38: #{maxvit_forward.5} parent=0 // pred_check
    _
  $region39: #{maxvit_forward.5} parent=0 // pred_check_branch
    %36 = sbr.rel (0) target = $region41
  $region40: #{maxvit_forward.5} parent=0 // pred_region
    _
  $region41: #{maxvit_forward.5} parent=0 // pred_fallthru
    _
  // Predicated region
  $region42: #{maxvit_forward.5} parent=0 // pred_check
    _
  $region43: #{maxvit_forward.5} parent=0 // pred_check_branch
    %38 = sbr.rel (0) target = $region45
  $region44: #{maxvit_forward.5} parent=0 // pred_region
    _
  $region45: #{maxvit_forward.5} parent=0 // pred_fallthru
    _
  // Predicated region
  $region46: #{maxvit_forward.5} parent=0 // pred_check
    _
  $region47: #{maxvit_forward.5} parent=0 // pred_check_branch
    %40 = sbr.rel (0) target = $region49
  $region48: #{maxvit_forward.5} parent=0 // pred_region
    _
  $region49: #{maxvit_forward.5} parent=0 // pred_fallthru
    _
  %v41 = vld [vmem:[%s0] sm:$0xff]
  %v42 = vld [vmem:[%s0 + $0x8] sm:$0x3]
  %v43 = vld [vmem:[%s2] sm:$0x1]
  %v44 = vld [vmem:[%s3] sm:$0x1]
  %vm45 = vcmask 523264
  %v46 = vsel %vm45, %v41, 0.0
  %47 = vadd.xlane.f32.xlu0 %v46
  %v48 = vpop.xlane.xlu0 %47
  %vm49 = vcmask 517120
  %v50 = vsel %vm49, %v42, 0.0
  %51 = vadd.xlane.f32.xlu0 %v50
  %v52 = vpop.xlane.xlu0 %51
  %v53 = vrcp.pop 64.0
  %v54 = vmul.f32 %v48, %v53
  %v55 = vmul.f32 %v52, %v53
  %v56 = vsub.f32 %v41, %v54
  %v57 = vsub.f32 %v42, %v55
  %v58 = vmul.f32 %v56, %v56
  %v59 = vmul.f32 %v57, %v57
  %v60 = vsel %vm45, %v58, 0.0
  %61 = vadd.xlane.f32.xlu0 %v60
  %v62 = vpop.xlane.xlu0 %61
  %v63 = vsel %vm49, %v59, 0.0
  %64 = vadd.xlane.f32.xlu0 %v63
  %v65 = vpop.xlane.xlu0 %64
  %v66 = vmul.f32 %v62, %v53
  %v67 = vmul.f32 %v65, %v53
  %v68 = vadd.f32 %v66, 1e-05
  %v69 = vadd.f32 %v67, 1e-05
  %v70 = vrsqrt.pop %v68
  %v71 = vrsqrt.pop %v69
  %v72 = vmul.f32 %v56, %v70
  %v73 = vmul.f32 %v57, %v71
  %v75 = vlaneseq
  %v76 = vshrl.u32 %v75, 7
  %v77 = vsub.s32 0, %v76
  %v78 = vrot.slane %v43, %v77
  %v80 = vmul.f32 %v72, %v78
  %v81 = vmul.f32 %v73, %v78
  %v83 = vlaneseq
  %v84 = vshrl.u32 %v83, 7
  %v85 = vsub.s32 0, %v84
  %v86 = vrot.slane %v44, %v85
  %v88 = vadd.f32 %v80, %v86
  %v89 = vadd.f32 %v81, %v86
  %v90 = vld [vmem:[%s4] sm:$0xff]
  %v91 = vld [vmem:[%s4 + $0x8] sm:$0xff]
  %v92 = vld [vmem:[%s4 + $0x10] sm:$0xff]
  %v93 = vld [vmem:[%s4 + $0x18] sm:$0xff]
  %v94 = vld [vmem:[%s4 + $0x20] sm:$0xff]
  %v95 = vld [vmem:[%s4 + $0x28] sm:$0xff]
  %v96 = vld [vmem:[%s4 + $0x30] sm:$0xff]
  %v97 = vld [vmem:[%s4 + $0x38] sm:$0xff]
  %v98 = vld [vmem:[%s4 + $0x40] sm:$0xff]
  %v99 = vld [vmem:[%s4 + $0x48] sm:$0xff]
  %v100 = vld [vmem:[%s4 + $0x50] sm:$0xff]
  %v101 = vld [vmem:[%s4 + $0x58] sm:$0xff]
  %v102 = vld [vmem:[%s4 + $0x60] sm:$0xff]
  %v103 = vld [vmem:[%s4 + $0x68] sm:$0xff]
  %v104 = vld [vmem:[%s4 + $0x70] sm:$0xff]
  %v105 = vld [vmem:[%s4 + $0x78] sm:$0xff]
  %v107 = vsel %vm45, %v88, 0
  %v110 = vsel %vm45, %v89, 0
  %112 = vmatprep.subr.mxu0 %v91
  %113 = vmatpush1.msra.mxu0 %v90
  %114 = vmatprep.subr.mxu0 %v93
  %115 = vmatpush1.msra.mxu0 %v92
  %116 = vmatprep.subr.mxu0 %v95
  %117 = vmatpush1.msra.mxu0 %v94
  %118 = vmatprep.subr.mxu0 %v97
  %119 = vmatpush1.msra.mxu0 %v96
  %120 = vmatprep.subr.mxu0 %v99
  %121 = vmatpush1.msra.mxu0 %v98
  %122 = vmatprep.subr.mxu0 %v101
  %123 = vmatpush1.msra.mxu0 %v100
  %124 = vmatprep.subr.mxu0 %v103
  %125 = vmatpush1.msra.mxu0 %v102
  %126 = vmatprep.subr.mxu0 %v105
  %127 = vmatpush1.msra.mxu0 %v104
  %128 = vmatprep.subr.mxu0 0.0
  %129 = vmatpush1.msra.mxu0 0.0
  %130 = vmatprep.subr.mxu0 0.0
  %131 = vmatpush1.msra.mxu0 0.0
  %132 = vmatprep.subr.mxu0 0.0
  %133 = vmatpush1.msra.mxu0 0.0
  %134 = vmatprep.subr.mxu0 0.0
  %135 = vmatpush1.msra.mxu0 0.0
  %136 = vmatprep.subr.mxu0 0.0
  %137 = vmatpush1.msra.mxu0 0.0
  %138 = vmatprep.subr.mxu0 0.0
  %139 = vmatpush1.msra.mxu0 0.0
  %140 = vmatprep.subr.mxu0 0.0
  %141 = vmatpush1.msra.mxu0 0.0
  %142 = vmatprep.subr.mxu0 0.0
  %143 = vmatpush1.msra.mxu0 0.0
  %144 = vmatprep.subr.mxu0 0.0
  %145 = vmatpush1.msra.mxu0 0.0
  %146 = vmatprep.subr.mxu0 0.0
  %147 = vmatpush1.msra.mxu0 0.0
  %148 = vmatprep.subr.mxu0 0.0
  %149 = vmatpush1.msra.mxu0 0.0
  %150 = vmatprep.subr.mxu0 0.0
  %151 = vmatpush1.msra.mxu0 0.0
  %152 = vmatprep.subr.mxu0 0.0
  %153 = vmatpush1.msra.mxu0 0.0
  %154 = vmatprep.subr.mxu0 0.0
  %155 = vmatpush1.msra.mxu0 0.0
  %156 = vmatprep.subr.mxu0 0.0
  %157 = vmatpush1.msra.mxu0 0.0
  %158 = vmatprep.subr.mxu0 0.0
  %159 = vmatpush1.msra.mxu0 0.0
  %160 = vmatprep.subr.mxu0 0.0
  %161 = vmatpush1.msra.mxu0 0.0
  %162 = vmatprep.subr.mxu0 0.0
  %163 = vmatpush1.msra.mxu0 0.0
  %164 = vmatprep.subr.mxu0 0.0
  %165 = vmatpush1.msra.mxu0 0.0
  %166 = vmatprep.subr.mxu0 0.0
  %167 = vmatpush1.msra.mxu0 0.0
  %168 = vmatprep.subr.mxu0 0.0
  %169 = vmatpush1.msra.mxu0 0.0
  %170 = vmatprep.subr.mxu0 0.0
  %171 = vmatpush1.msra.mxu0 0.0
  %172 = vmatprep.subr.mxu0 0.0
  %173 = vmatpush1.msra.mxu0 0.0
  %174 = vmatprep.subr.mxu0 0.0
  %175 = vmatpush1.msra.mxu0 0.0
  %176 = vmatprep.mubr.f32.mxu0 0.0
  %177 = vmatmul.mubr.f32.gmra.mrb[0].mxu0 %v107
  %v178 = vpop.f32.mrb[0].mxu0
  %v179 = vadd.f32 0.0, %v178
  %v180 = vpop.f32.mrb[0].mxu0
  %v181 = vadd.f32 0.0, %v180
  %182 = vmatprep.mubr.f32.mxu0 0.0
  %183 = vmatmul.mubr.f32.gmra.mrb[0].mxu0 %v110
  %v184 = vpop.f32.mrb[0].mxu0
  %v185 = vadd.f32 0.0, %v184
  %v186 = vpop.f32.mrb[0].mxu0
  %v187 = vadd.f32 0.0, %v186
  %188 = vdwg.mxu0
  %v189 = vld [vmem:[%s1] sm:$0xff]
  %v190 = vld [vmem:[%s1 + $0x8] sm:$0xff]
  %v191 = vld [vmem:[%s1 + $0x10] sm:$0xff]
  %v192 = vld [vmem:[%s1 + $0x18] sm:$0xff]
  %v193 = vld [vmem:[%s1 + $0x20] sm:$0xff]
  %v194 = vld [vmem:[%s1 + $0x28] sm:$0xff]
  %v195 = vld [vmem:[%s1 + $0x30] sm:$0xff]
  %v196 = vld [vmem:[%s1 + $0x38] sm:$0xff]
  %198 = vrot.lane.b32.xlu0 %v179, 64
  %v199 = vpop.permute.xlu0 %198
  %v201 = vmul.f32 %v179, %v199
  %v203 = vsel %vm45, %v201, 0
  %205 = vmatprep.subr.mxu0 0.0
  %206 = vmatpush1.msra.mxu0 %v189
  %207 = vmatprep.subr.mxu0 0.0
  %208 = vmatpush1.msra.mxu0 %v190
  %209 = vmatprep.subr.mxu0 0.0
  %210 = vmatpush1.msra.mxu0 %v191
  %211 = vmatprep.subr.mxu0 0.0
  %212 = vmatpush1.msra.mxu0 %v192
  %213 = vmatprep.subr.mxu0 0.0
  %214 = vmatpush1.msra.mxu0 %v193
  %215 = vmatprep.subr.mxu0 0.0
  %216 = vmatpush1.msra.mxu0 %v194
  %217 = vmatprep.subr.mxu0 0.0
  %218 = vmatpush1.msra.mxu0 %v195
  %219 = vmatprep.subr.mxu0 0.0
  %220 = vmatpush1.msra.mxu0 %v196
  %221 = vmatprep.subr.mxu0 0.0
  %222 = vmatpush1.msra.mxu0 0.0
  %223 = vmatprep.subr.mxu0 0.0
  %224 = vmatpush1.msra.mxu0 0.0
  %225 = vmatprep.subr.mxu0 0.0
  %226 = vmatpush1.msra.mxu0 0.0
  %227 = vmatprep.subr.mxu0 0.0
  %228 = vmatpush1.msra.mxu0 0.0
  %229 = vmatprep.subr.mxu0 0.0
  %230 = vmatpush1.msra.mxu0 0.0
  %231 = vmatprep.subr.mxu0 0.0
  %232 = vmatpush1.msra.mxu0 0.0
  %233 = vmatprep.subr.mxu0 0.0
  %234 = vmatpush1.msra.mxu0 0.0
  %235 = vmatprep.subr.mxu0 0.0
  %236 = vmatpush1.msra.mxu0 0.0
  %237 = vmatprep.subr.mxu0 0.0
  %238 = vmatpush1.msra.mxu0 0.0
  %239 = vmatprep.subr.mxu0 0.0
  %240 = vmatpush1.msra.mxu0 0.0
  %241 = vmatprep.subr.mxu0 0.0
  %242 = vmatpush1.msra.mxu0 0.0
  %243 = vmatprep.subr.mxu0 0.0
  %244 = vmatpush1.msra.mxu0 0.0
  %245 = vmatprep.subr.mxu0 0.0
  %246 = vmatpush1.msra.mxu0 0.0
  %247 = vmatprep.subr.mxu0 0.0
  %248 = vmatpush1.msra.mxu0 0.0
  %249 = vmatprep.subr.mxu0 0.0
  %250 = vmatpush1.msra.mxu0 0.0
  %251 = vmatprep.subr.mxu0 0.0
  %252 = vmatpush1.msra.mxu0 0.0
  %253 = vmatprep.subr.mxu0 0.0
  %254 = vmatpush1.msra.mxu0 0.0
  %255 = vmatprep.subr.mxu0 0.0
  %256 = vmatpush1.msra.mxu0 0.0
  %257 = vmatprep.subr.mxu0 0.0
  %258 = vmatpush1.msra.mxu0 0.0
  %259 = vmatprep.subr.mxu0 0.0
  %260 = vmatpush1.msra.mxu0 0.0
  %261 = vmatprep.subr.mxu0 0.0
  %262 = vmatpush1.msra.mxu0 0.0
  %263 = vmatprep.subr.mxu0 0.0
  %264 = vmatpush1.msra.mxu0 0.0
  %265 = vmatprep.subr.mxu0 0.0
  %266 = vmatpush1.msra.mxu0 0.0
  %267 = vmatprep.subr.mxu0 0.0
  %268 = vmatpush1.msra.mxu0 0.0
  %269 = vmatprep.mubr.f32.mxu0 0.0
  %270 = vmatmul.mubr.f32.gmra.mrb[0].mxu0 %v203
  %v271 = vpop.f32.mrb[0].mxu0
  %v272 = vadd.f32 0.0, %v271
  %v273 = vpop.f32.mrb[0].mxu0
  %274 = vdwg.mxu0
  %v275 = vmul.f32 %v272, 0.25
  %vm277 = vcmask 1042432
  %v278 = vrot.slane %v179, 5
  %v279 = vrot.slane %v185, 5
  %v280 = vsel %vm277, %v278, %v279
  %281 = vrot.lane.b32.xlu0 %v280, 64
  %v282 = vpop.permute.xlu0 %281
  %v284 = vmul.f32 %v179, %v282
  %v286 = vsel %vm45, %v284, 0
  %288 = vmatprep.subr.mxu0 0.0
  %289 = vmatpush1.msra.mxu0 %v189
  %290 = vmatprep.subr.mxu0 0.0
  %291 = vmatpush1.msra.mxu0 %v190
  %292 = vmatprep.subr.mxu0 0.0
  %293 = vmatpush1.msra.mxu0 %v191
  %294 = vmatprep.subr.mxu0 0.0
  %295 = vmatpush1.msra.mxu0 %v192
  %296 = vmatprep.subr.mxu0 0.0
  %297 = vmatpush1.msra.mxu0 %v193
  %298 = vmatprep.subr.mxu0 0.0
  %299 = vmatpush1.msra.mxu0 %v194
  %300 = vmatprep.subr.mxu0 0.0
  %301 = vmatpush1.msra.mxu0 %v195
  %302 = vmatprep.subr.mxu0 0.0
  %303 = vmatpush1.msra.mxu0 %v196
  %304 = vmatprep.subr.mxu0 0.0
  %305 = vmatpush1.msra.mxu0 0.0
  %306 = vmatprep.subr.mxu0 0.0
  %307 = vmatpush1.msra.mxu0 0.0
  %308 = vmatprep.subr.mxu0 0.0
  %309 = vmatpush1.msra.mxu0 0.0
  %310 = vmatprep.subr.mxu0 0.0
  %311 = vmatpush1.msra.mxu0 0.0
  %312 = vmatprep.subr.mxu0 0.0
  %313 = vmatpush1.msra.mxu0 0.0
  %314 = vmatprep.subr.mxu0 0.0
  %315 = vmatpush1.msra.mxu0 0.0
  %316 = vmatprep.subr.mxu0 0.0
  %317 = vmatpush1.msra.mxu0 0.0
  %318 = vmatprep.subr.mxu0 0.0
  %319 = vmatpush1.msra.mxu0 0.0
  %320 = vmatprep.subr.mxu0 0.0
  %321 = vmatpush1.msra.mxu0 0.0
  %322 = vmatprep.subr.mxu0 0.0
  %323 = vmatpush1.msra.mxu0 0.0
  %324 = vmatprep.subr.mxu0 0.0
  %325 = vmatpush1.msra.mxu0 0.0
  %326 = vmatprep.subr.mxu0 0.0
  %327 = vmatpush1.msra.mxu0 0.0
  %328 = vmatprep.subr.mxu0 0.0
  %329 = vmatpush1.msra.mxu0 0.0
  %330 = vmatprep.subr.mxu0 0.0
  %331 = vmatpush1.msra.mxu0 0.0
  %332 = vmatprep.subr.mxu0 0.0
  %333 = vmatpush1.msra.mxu0 0.0
  %334 = vmatprep.subr.mxu0 0.0
  %335 = vmatpush1.msra.mxu0 0.0
  %336 = vmatprep.subr.mxu0 0.0
  %337 = vmatpush1.msra.mxu0 0.0
  %338 = vmatprep.subr.mxu0 0.0
  %339 = vmatpush1.msra.mxu0 0.0
  %340 = vmatprep.subr.mxu0 0.0
  %341 = vmatpush1.msra.mxu0 0.0
  %342 = vmatprep.subr.mxu0 0.0
  %343 = vmatpush1.msra.mxu0 0.0
  %344 = vmatprep.subr.mxu0 0.0
  %345 = vmatpush1.msra.mxu0 0.0
  %346 = vmatprep.subr.mxu0 0.0
  %347 = vmatpush1.msra.mxu0 0.0
  %348 = vmatprep.subr.mxu0 0.0
  %349 = vmatpush1.msra.mxu0 0.0
  %350 = vmatprep.subr.mxu0 0.0
  %351 = vmatpush1.msra.mxu0 0.0
  %352 = vmatprep.mubr.f32.mxu0 0.0
  %353 = vmatmul.mubr.f32.gmra.mrb[0].mxu0 %v286
  %v354 = vpop.f32.mrb[0].mxu0
  %v355 = vadd.f32 0.0, %v354
  %v356 = vpop.f32.mrb[0].mxu0
  %357 = vdwg.mxu0
  %v358 = vmul.f32 %v355, 0.25
  %v359 = vmax.f32 %v275, %v358
  %v360 = vsub.f32 %v275, %v359
  %v361 = vmul.f32 %v360, 1.442695
  %v362 = vpow.pop %v361
  %v363 = vsub.f32 %v358, %v359
  %v364 = vmul.f32 %v363, 1.442695
  %v365 = vpow.pop %v364
  %v366 = vadd.f32 %v362, %v365
  %v367 = vrcp.pop %v366
  %v368 = vmul.f32 %v362, %v367
  %v369 = vmul.f32 %v368, %v181
  %v370 = vadd.f32 %v369, 0.0
  %v371 = vmul.f32 %v365, %v367
  %v374 = vrot.slane %v181, 5
  %v375 = vrot.slane %v187, 5
  %v376 = vsel %vm277, %v374, %v375
  %v378 = vmul.f32 %v371, %v376
  %v379 = vadd.f32 %v370, %v378
  %vm380 = vcmask 520192
  %381 = vst.msk [vmem:[#allocation2] sm:$0x1f] %vm380, %v379
  %v382 = vrot.slane %v179, 3
  %383 = vrot.lane.b32.xlu0 %v382, 64
  %v384 = vpop.permute.xlu0 %383
  %v386 = vmul.f32 %v179, %v384
  %v387 = vmul.f32 %v185, %v384
  %v390 = vrot.slane %v386, 5
  %v391 = vrot.slane %v387, 5
  %v392 = vsel %vm277, %v390, %v391
  %v393 = vsel %vm45, %v392, 0
  %395 = vmatprep.subr.mxu0 0.0
  %396 = vmatpush1.msra.mxu0 %v189
  %397 = vmatprep.subr.mxu0 0.0
  %398 = vmatpush1.msra.mxu0 %v190
  %399 = vmatprep.subr.mxu0 0.0
  %400 = vmatpush1.msra.mxu0 %v191
  %401 = vmatprep.subr.mxu0 0.0
  %402 = vmatpush1.msra.mxu0 %v192
  %403 = vmatprep.subr.mxu0 0.0
  %404 = vmatpush1.msra.mxu0 %v193
  %405 = vmatprep.subr.mxu0 0.0
  %406 = vmatpush1.msra.mxu0 %v194
  %407 = vmatprep.subr.mxu0 0.0
  %408 = vmatpush1.msra.mxu0 %v195
  %409 = vmatprep.subr.mxu0 0.0
  %410 = vmatpush1.msra.mxu0 %v196
  %411 = vmatprep.subr.mxu0 0.0
  %412 = vmatpush1.msra.mxu0 0.0
  %413 = vmatprep.subr.mxu0 0.0
  %414 = vmatpush1.msra.mxu0 0.0
  %415 = vmatprep.subr.mxu0 0.0
  %416 = vmatpush1.msra.mxu0 0.0
  %417 = vmatprep.subr.mxu0 0.0
  %418 = vmatpush1.msra.mxu0 0.0
  %419 = vmatprep.subr.mxu0 0.0
  %420 = vmatpush1.msra.mxu0 0.0
  %421 = vmatprep.subr.mxu0 0.0
  %422 = vmatpush1.msra.mxu0 0.0
  %423 = vmatprep.subr.mxu0 0.0
  %424 = vmatpush1.msra.mxu0 0.0
  %425 = vmatprep.subr.mxu0 0.0
  %426 = vmatpush1.msra.mxu0 0.0
  %427 = vmatprep.subr.mxu0 0.0
  %428 = vmatpush1.msra.mxu0 0.0
  %429 = vmatprep.subr.mxu0 0.0
  %430 = vmatpush1.msra.mxu0 0.0
  %431 = vmatprep.subr.mxu0 0.0
  %432 = vmatpush1.msra.mxu0 0.0
  %433 = vmatprep.subr.mxu0 0.0
  %434 = vmatpush1.msra.mxu0 0.0
  %435 = vmatprep.subr.mxu0 0.0
  %436 = vmatpush1.msra.mxu0 0.0
  %437 = vmatprep.subr.mxu0 0.0
  %438 = vmatpush1.msra.mxu0 0.0
  %439 = vmatprep.subr.mxu0 0.0
  %440 = vmatpush1.msra.mxu0 0.0
  %441 = vmatprep.subr.mxu0 0.0
  %442 = vmatpush1.msra.mxu0 0.0
  %443 = vmatprep.subr.mxu0 0.0
  %444 = vmatpush1.msra.mxu0 0.0
  %445 = vmatprep.subr.mxu0 0.0
  %446 = vmatpush1.msra.mxu0 0.0
  %447 = vmatprep.subr.mxu0 0.0
  %448 = vmatpush1.msra.mxu0 0.0
  %449 = vmatprep.subr.mxu0 0.0
  %450 = vmatpush1.msra.mxu0 0.0
  %451 = vmatprep.subr.mxu0 0.0
  %452 = vmatpush1.msra.mxu0 0.0
  %453 = vmatprep.subr.mxu0 0.0
  %454 = vmatpush1.msra.mxu0 0.0
  %455 = vmatprep.subr.mxu0 0.0
  %456 = vmatpush1.msra.mxu0 0.0
  %457 = vmatprep.subr.mxu0 0.0
  %458 = vmatpush1.msra.mxu0 0.0
  %459 = vmatprep.mubr.f32.mxu0 0.0
  %460 = vmatmul.mubr.f32.gmra.mrb[0].mxu0 %v393
  %v461 = vpop.f32.mrb[0].mxu0
  %v462 = vadd.f32 0.0, %v461
  %v463 = vpop.f32.mrb[0].mxu0
  %464 = vdwg.mxu0
  %v465 = vmul.f32 %v462, 0.25
  %466 = vrot.lane.b32.xlu0 %v185, 64
  %v467 = vpop.permute.xlu0 %466
  %v469 = vmul.f32 %v185, %v467
  %v471 = vrot.slane %v201, 5
  %v472 = vrot.slane %v469, 5
  %v473 = vsel %vm277, %v471, %v472
  %v474 = vsel %vm45, %v473, 0
  %476 = vmatprep.subr.mxu0 0.0
  %477 = vmatpush1.msra.mxu0 %v189
  %478 = vmatprep.subr.mxu0 0.0
  %479 = vmatpush1.msra.mxu0 %v190
  %480 = vmatprep.subr.mxu0 0.0
  %481 = vmatpush1.msra.mxu0 %v191
  %482 = vmatprep.subr.mxu0 0.0
  %483 = vmatpush1.msra.mxu0 %v192
  %484 = vmatprep.subr.mxu0 0.0
  %485 = vmatpush1.msra.mxu0 %v193
  %486 = vmatprep.subr.mxu0 0.0
  %487 = vmatpush1.msra.mxu0 %v194
  %488 = vmatprep.subr.mxu0 0.0
  %489 = vmatpush1.msra.mxu0 %v195
  %490 = vmatprep.subr.mxu0 0.0
  %491 = vmatpush1.msra.mxu0 %v196
  %492 = vmatprep.subr.mxu0 0.0
  %493 = vmatpush1.msra.mxu0 0.0
  %494 = vmatprep.subr.mxu0 0.0
  %495 = vmatpush1.msra.mxu0 0.0
  %496 = vmatprep.subr.mxu0 0.0
  %497 = vmatpush1.msra.mxu0 0.0
  %498 = vmatprep.subr.mxu0 0.0
  %499 = vmatpush1.msra.mxu0 0.0
  %500 = vmatprep.subr.mxu0 0.0
  %501 = vmatpush1.msra.mxu0 0.0
  %502 = vmatprep.subr.mxu0 0.0
  %503 = vmatpush1.msra.mxu0 0.0
  %504 = vmatprep.subr.mxu0 0.0
  %505 = vmatpush1.msra.mxu0 0.0
  %506 = vmatprep.subr.mxu0 0.0
  %507 = vmatpush1.msra.mxu0 0.0
  %508 = vmatprep.subr.mxu0 0.0
  %509 = vmatpush1.msra.mxu0 0.0
  %510 = vmatprep.subr.mxu0 0.0
  %511 = vmatpush1.msra.mxu0 0.0
  %512 = vmatprep.subr.mxu0 0.0
  %513 = vmatpush1.msra.mxu0 0.0
  %514 = vmatprep.subr.mxu0 0.0
  %515 = vmatpush1.msra.mxu0 0.0
  %516 = vmatprep.subr.mxu0 0.0
  %517 = vmatpush1.msra.mxu0 0.0
  %518 = vmatprep.subr.mxu0 0.0
  %519 = vmatpush1.msra.mxu0 0.0
  %520 = vmatprep.subr.mxu0 0.0
  %521 = vmatpush1.msra.mxu0 0.0
  %522 = vmatprep.subr.mxu0 0.0
  %523 = vmatpush1.msra.mxu0 0.0
  %524 = vmatprep.subr.mxu0 0.0
  %525 = vmatpush1.msra.mxu0 0.0
  %526 = vmatprep.subr.mxu0 0.0
  %527 = vmatpush1.msra.mxu0 0.0
  %528 = vmatprep.subr.mxu0 0.0
  %529 = vmatpush1.msra.mxu0 0.0
  %530 = vmatprep.subr.mxu0 0.0
  %531 = vmatpush1.msra.mxu0 0.0
  %532 = vmatprep.subr.mxu0 0.0
  %533 = vmatpush1.msra.mxu0 0.0
  %534 = vmatprep.subr.mxu0 0.0
  %535 = vmatpush1.msra.mxu0 0.0
  %536 = vmatprep.subr.mxu0 0.0
  %537 = vmatpush1.msra.mxu0 0.0
  %538 = vmatprep.subr.mxu0 0.0
  %539 = vmatpush1.msra.mxu0 0.0
  %540 = vmatprep.mubr.f32.mxu0 0.0
  %541 = vmatmul.mubr.f32.gmra.mrb[0].mxu0 %v474
  %v542 = vpop.f32.mrb[0].mxu0
  %v543 = vadd.f32 0.0, %v542
  %v544 = vpop.f32.mrb[0].mxu0
  %545 = vdwg.mxu0
  %v546 = vmul.f32 %v543, 0.25
  %v547 = vmax.f32 %v465, %v546
  %v548 = vsub.f32 %v465, %v547
  %v549 = vmul.f32 %v548, 1.442695
  %v550 = vpow.pop %v549
  %v551 = vsub.f32 %v546, %v547
  %v552 = vmul.f32 %v551, 1.442695
  %v553 = vpow.pop %v552
  %v554 = vadd.f32 %v550, %v553
  %v555 = vrcp.pop %v554
  %v556 = vmul.f32 %v550, %v555
  %v557 = vmul.f32 %v556, %v181
  %v558 = vadd.f32 %v557, 0.0
  %v559 = vmul.f32 %v553, %v555
  %v560 = vmul.f32 %v559, %v376
  %v561 = vadd.f32 %v558, %v560
  %562 = vst.msk [vmem:[#allocation2 + $0x5] sm:$0x1f] %vm380, %v561
  %v563 = vld [vmem:[#allocation2] sm:$0xff]
  %v564 = vld [vmem:[#allocation2 + $0x8] sm:$0x3]
  %v565 = vld [vmem:[%s5] sm:$0xff]
  %v566 = vld [vmem:[%s5 + $0x8] sm:$0xff]
  %v567 = vld [vmem:[%s5 + $0x10] sm:$0xff]
  %v568 = vld [vmem:[%s5 + $0x18] sm:$0xff]
  %v569 = vld [vmem:[%s5 + $0x20] sm:$0xff]
  %v570 = vld [vmem:[%s5 + $0x28] sm:$0xff]
  %v571 = vld [vmem:[%s5 + $0x30] sm:$0xff]
  %v572 = vld [vmem:[%s5 + $0x38] sm:$0xff]
  %v574 = vsel %vm45, %v563, 0
  %v577 = vsel %vm45, %v564, 0
  %579 = vmatprep.subr.mxu0 0.0
  %580 = vmatpush1.msra.mxu0 %v565
  %581 = vmatprep.subr.mxu0 0.0
  %582 = vmatpush1.msra.mxu0 %v566
  %583 = vmatprep.subr.mxu0 0.0
  %584 = vmatpush1.msra.mxu0 %v567
  %585 = vmatprep.subr.mxu0 0.0
  %586 = vmatpush1.msra.mxu0 %v568
  %587 = vmatprep.subr.mxu0 0.0
  %588 = vmatpush1.msra.mxu0 %v569
  %589 = vmatprep.subr.mxu0 0.0
  %590 = vmatpush1.msra.mxu0 %v570
  %591 = vmatprep.subr.mxu0 0.0
  %592 = vmatpush1.msra.mxu0 %v571
  %593 = vmatprep.subr.mxu0 0.0
  %594 = vmatpush1.msra.mxu0 %v572
  %595 = vmatprep.subr.mxu0 0.0
  %596 = vmatpush1.msra.mxu0 0.0
  %597 = vmatprep.subr.mxu0 0.0
  %598 = vmatpush1.msra.mxu0 0.0
  %599 = vmatprep.subr.mxu0 0.0
  %600 = vmatpush1.msra.mxu0 0.0
  %601 = vmatprep.subr.mxu0 0.0
  %602 = vmatpush1.msra.mxu0 0.0
  %603 = vmatprep.subr.mxu0 0.0
  %604 = vmatpush1.msra.mxu0 0.0
  %605 = vmatprep.subr.mxu0 0.0
  %606 = vmatpush1.msra.mxu0 0.0
  %607 = vmatprep.subr.mxu0 0.0
  %608 = vmatpush1.msra.mxu0 0.0
  %609 = vmatprep.subr.mxu0 0.0
  %610 = vmatpush1.msra.mxu0 0.0
  %611 = vmatprep.subr.mxu0 0.0
  %612 = vmatpush1.msra.mxu0 0.0
  %613 = vmatprep.subr.mxu0 0.0
  %614 = vmatpush1.msra.mxu0 0.0
  %615 = vmatprep.subr.mxu0 0.0
  %616 = vmatpush1.msra.mxu0 0.0
  %617 = vmatprep.subr.mxu0 0.0
  %618 = vmatpush1.msra.mxu0 0.0
  %619 = vmatprep.subr.mxu0 0.0
  %620 = vmatpush1.msra.mxu0 0.0
  %621 = vmatprep.subr.mxu0 0.0
  %622 = vmatpush1.msra.mxu0 0.0
  %623 = vmatprep.subr.mxu0 0.0
  %624 = vmatpush1.msra.mxu0 0.0
  %625 = vmatprep.subr.mxu0 0.0
  %626 = vmatpush1.msra.mxu0 0.0
  %627 = vmatprep.subr.mxu0 0.0
  %628 = vmatpush1.msra.mxu0 0.0
  %629 = vmatprep.subr.mxu0 0.0
  %630 = vmatpush1.msra.mxu0 0.0
  %631 = vmatprep.subr.mxu0 0.0
  %632 = vmatpush1.msra.mxu0 0.0
  %633 = vmatprep.subr.mxu0 0.0
  %634 = vmatpush1.msra.mxu0 0.0
  %635 = vmatprep.subr.mxu0 0.0
  %636 = vmatpush1.msra.mxu0 0.0
  %637 = vmatprep.subr.mxu0 0.0
  %638 = vmatpush1.msra.mxu0 0.0
  %639 = vmatprep.subr.mxu0 0.0
  %640 = vmatpush1.msra.mxu0 0.0
  %641 = vmatprep.subr.mxu0 0.0
  %642 = vmatpush1.msra.mxu0 0.0
  %643 = vmatprep.mubr.f32.mxu0 0.0
  %644 = vmatmul.mubr.f32.gmra.mrb[0].mxu0 %v574
  %v645 = vpop.f32.mrb[0].mxu0
  %v646 = vadd.f32 0.0, %v645
  %v647 = vpop.f32.mrb[0].mxu0
  %648 = vmatprep.mubr.f32.mxu0 0.0
  %649 = vmatmul.mubr.f32.gmra.mrb[0].mxu0 %v577
  %v650 = vpop.f32.mrb[0].mxu0
  %v651 = vadd.f32 0.0, %v650
  %v652 = vpop.f32.mrb[0].mxu0
  %653 = vdwg.mxu0
  %v654 = vadd.f32 %v41, %v646
  %v655 = vadd.f32 %v42, %v651
  %v656 = vld [vmem:[%s6] sm:$0x1]
  %v657 = vld [vmem:[%s7] sm:$0x1]
  %v658 = vsel %vm45, %v654, 0.0
  %659 = vadd.xlane.f32.xlu0 %v658
  %v660 = vpop.xlane.xlu0 %659
  %v661 = vsel %vm49, %v655, 0.0
  %662 = vadd.xlane.f32.xlu0 %v661
  %v663 = vpop.xlane.xlu0 %662
  %v664 = vmul.f32 %v660, %v53
  %v665 = vmul.f32 %v663, %v53
  %v666 = vsub.f32 %v654, %v664
  %v667 = vsub.f32 %v655, %v665
  %v668 = vmul.f32 %v666, %v666
  %v669 = vmul.f32 %v667, %v667
  %v670 = vsel %vm45, %v668, 0.0
  %671 = vadd.xlane.f32.xlu0 %v670
  %v672 = vpop.xlane.xlu0 %671
  %v673 = vsel %vm49, %v669, 0.0
  %674 = vadd.xlane.f32.xlu0 %v673
  %v675 = vpop.xlane.xlu0 %674
  %v676 = vmul.f32 %v672, %v53
  %v677 = vmul.f32 %v675, %v53
  %v678 = vadd.f32 %v676, 1e-05
  %v679 = vadd.f32 %v677, 1e-05
  %v680 = vrsqrt.pop %v678
  %v681 = vrsqrt.pop %v679
  %v682 = vmul.f32 %v666, %v680
  %v683 = vmul.f32 %v667, %v681
  %v685 = vlaneseq
  %v686 = vshrl.u32 %v685, 7
  %v687 = vsub.s32 0, %v686
  %v688 = vrot.slane %v656, %v687
  %v690 = vmul.f32 %v682, %v688
  %v691 = vmul.f32 %v683, %v688
  %v693 = vlaneseq
  %v694 = vshrl.u32 %v693, 7
  %v695 = vsub.s32 0, %v694
  %v696 = vrot.slane %v657, %v695
  %v698 = vadd.f32 %v690, %v696
  %v699 = vadd.f32 %v691, %v696
  %v700 = vld [vmem:[%s8] sm:$0xff]
  %v701 = vld [vmem:[%s8 + $0x8] sm:$0xff]
  %v702 = vld [vmem:[%s8 + $0x10] sm:$0xff]
  %v703 = vld [vmem:[%s8 + $0x18] sm:$0xff]
  %v704 = vld [vmem:[%s8 + $0x20] sm:$0xff]
  %v705 = vld [vmem:[%s8 + $0x28] sm:$0xff]
  %v706 = vld [vmem:[%s8 + $0x30] sm:$0xff]
  %v707 = vld [vmem:[%s8 + $0x38] sm:$0xff]
  %v708 = vld [vmem:[%s8 + $0x40] sm:$0xff]
  %v709 = vld [vmem:[%s8 + $0x48] sm:$0xff]
  %v710 = vld [vmem:[%s8 + $0x50] sm:$0xff]
  %v711 = vld [vmem:[%s8 + $0x58] sm:$0xff]
  %v712 = vld [vmem:[%s8 + $0x60] sm:$0xff]
  %v713 = vld [vmem:[%s8 + $0x68] sm:$0xff]
  %v714 = vld [vmem:[%s8 + $0x70] sm:$0xff]
  %v715 = vld [vmem:[%s8 + $0x78] sm:$0xff]
  %v716 = vld [vmem:[%s9] sm:$0x3]
  %v718 = vlaneseq
  %v719 = vshrl.u32 %v718, 7
  %v720 = vsub.s32 0, %v719
  %v721 = vrot.slane %v716, %v720
  %v722 = vlaneseq
  %v723 = vshrl.u32 %v722, 7
  %v724 = vsub.s32 1, %v723
  %v725 = vrot.slane %v716, %v724
  %v729 = vsel %vm45, %v698, 0
  %v732 = vsel %vm45, %v699, 0
  %734 = vmatprep.subr.mxu0 %v701
  %735 = vmatpush1.msra.mxu0 %v700
  %736 = vmatprep.subr.mxu0 %v703
  %737 = vmatpush1.msra.mxu0 %v702
  %738 = vmatprep.subr.mxu0 %v705
  %739 = vmatpush1.msra.mxu0 %v704
  %740 = vmatprep.subr.mxu0 %v707
  %741 = vmatpush1.msra.mxu0 %v706
  %742 = vmatprep.subr.mxu0 %v709
  %743 = vmatpush1.msra.mxu0 %v708
  %744 = vmatprep.subr.mxu0 %v711
  %745 = vmatpush1.msra.mxu0 %v710
  %746 = vmatprep.subr.mxu0 %v713
  %747 = vmatpush1.msra.mxu0 %v712
  %748 = vmatprep.subr.mxu0 %v715
  %749 = vmatpush1.msra.mxu0 %v714
  %750 = vmatprep.subr.mxu0 0.0
  %751 = vmatpush1.msra.mxu0 0.0
  %752 = vmatprep.subr.mxu0 0.0
  %753 = vmatpush1.msra.mxu0 0.0
  %754 = vmatprep.subr.mxu0 0.0
  %755 = vmatpush1.msra.mxu0 0.0
  %756 = vmatprep.subr.mxu0 0.0
  %757 = vmatpush1.msra.mxu0 0.0
  %758 = vmatprep.subr.mxu0 0.0
  %759 = vmatpush1.msra.mxu0 0.0
  %760 = vmatprep.subr.mxu0 0.0
  %761 = vmatpush1.msra.mxu0 0.0
  %762 = vmatprep.subr.mxu0 0.0
  %763 = vmatpush1.msra.mxu0 0.0
  %764 = vmatprep.subr.mxu0 0.0
  %765 = vmatpush1.msra.mxu0 0.0
  %766 = vmatprep.subr.mxu0 0.0
  %767 = vmatpush1.msra.mxu0 0.0
  %768 = vmatprep.subr.mxu0 0.0
  %769 = vmatpush1.msra.mxu0 0.0
  %770 = vmatprep.subr.mxu0 0.0
  %771 = vmatpush1.msra.mxu0 0.0
  %772 = vmatprep.subr.mxu0 0.0
  %773 = vmatpush1.msra.mxu0 0.0
  %774 = vmatprep.subr.mxu0 0.0
  %775 = vmatpush1.msra.mxu0 0.0
  %776 = vmatprep.subr.mxu0 0.0
  %777 = vmatpush1.msra.mxu0 0.0
  %778 = vmatprep.subr.mxu0 0.0
  %779 = vmatpush1.msra.mxu0 0.0
  %780 = vmatprep.subr.mxu0 0.0
  %781 = vmatpush1.msra.mxu0 0.0
  %782 = vmatprep.subr.mxu0 0.0
  %783 = vmatpush1.msra.mxu0 0.0
  %784 = vmatprep.subr.mxu0 0.0
  %785 = vmatpush1.msra.mxu0 0.0
  %786 = vmatprep.subr.mxu0 0.0
  %787 = vmatpush1.msra.mxu0 0.0
  %788 = vmatprep.subr.mxu0 0.0
  %789 = vmatpush1.msra.mxu0 0.0
  %790 = vmatprep.subr.mxu0 0.0
  %791 = vmatpush1.msra.mxu0 0.0
  %792 = vmatprep.subr.mxu0 0.0
  %793 = vmatpush1.msra.mxu0 0.0
  %794 = vmatprep.subr.mxu0 0.0
  %795 = vmatpush1.msra.mxu0 0.0
  %796 = vmatprep.subr.mxu0 0.0
  %797 = vmatpush1.msra.mxu0 0.0
  %798 = vmatprep.mubr.f32.mxu0 0.0
  %799 = vmatmul.mubr.f32.gmra.mrb[0].mxu0 %v729
  %v800 = vpop.f32.mrb[0].mxu0
  %v801 = vadd.f32 %v721, %v800
  %v802 = vpop.f32.mrb[0].mxu0
  %v803 = vadd.f32 %v725, %v802
  %804 = vmatprep.mubr.f32.mxu0 0.0
  %805 = vmatmul.mubr.f32.gmra.mrb[0].mxu0 %v732
  %v806 = vpop.f32.mrb[0].mxu0
  %v807 = vadd.f32 %v721, %v806
  %v808 = vpop.f32.mrb[0].mxu0
  %v809 = vadd.f32 %v725, %v808
  %810 = vdwg.mxu0
  %v811 = vmul.f32 %v801, 0.5
  %v812 = vmul.f32 %v803, 0.5
  %v813 = vmul.f32 %v807, 0.5
  %v814 = vmul.f32 %v809, 0.5
  %v815 = vmul.f32 %v801, 0.70710677
  %v816 = vmul.f32 %v803, 0.70710677
  %v817 = vmul.f32 %v807, 0.70710677
  %v818 = vmul.f32 %v809, 0.70710677
  %vm819 = vcmp.lt.f32.partialorder %v815, 0.0
  %vm820 = vcmp.lt.f32.partialorder %v816, 0.0
  %vm821 = vcmp.lt.f32.partialorder %v817, 0.0
  %vm822 = vcmp.lt.f32.partialorder %v818, 0.0
  %v823 = vsel %vm819, -1.0, 1.0
  %v824 = vsel %vm820, -1.0, 1.0
  %v825 = vsel %vm821, -1.0, 1.0
  %v826 = vsel %vm822, -1.0, 1.0
  %v827 = vand.u32 2147483647, %v815
  %v828 = vand.u32 2147483647, %v816
  %v829 = vand.u32 2147483647, %v817
  %v830 = vand.u32 2147483647, %v818
  %v831 = vmul.f32 %v827, 0.3275911
  %v832 = vmul.f32 %v828, 0.3275911
  %v833 = vmul.f32 %v829, 0.3275911
  %v834 = vmul.f32 %v830, 0.3275911
  %v835 = vadd.f32 %v831, 1.0
  %v836 = vadd.f32 %v832, 1.0
  %v837 = vadd.f32 %v833, 1.0
  %v838 = vadd.f32 %v834, 1.0
  %v839 = vrcp.pop %v835
  %v840 = vmul.f32 1.0, %v839
  %v841 = vrcp.pop %v836
  %v842 = vmul.f32 1.0, %v841
  %v843 = vrcp.pop %v837
  %v844 = vmul.f32 1.0, %v843
  %v845 = vrcp.pop %v838
  %v846 = vmul.f32 1.0, %v845
  %v847 = vmul.f32 %v840, 1.0614054
  %v848 = vmul.f32 %v842, 1.0614054
  %v849 = vmul.f32 %v844, 1.0614054
  %v850 = vmul.f32 %v846, 1.0614054
  %v851 = vadd.f32 %v847, -1.4531521
  %v852 = vadd.f32 %v848, -1.4531521
  %v853 = vadd.f32 %v849, -1.4531521
  %v854 = vadd.f32 %v850, -1.4531521
  %v855 = vmul.f32 %v851, %v840
  %v856 = vmul.f32 %v852, %v842
  %v857 = vmul.f32 %v853, %v844
  %v858 = vmul.f32 %v854, %v846
  %v859 = vadd.f32 %v855, 1.4214138
  %v860 = vadd.f32 %v856, 1.4214138
  %v861 = vadd.f32 %v857, 1.4214138
  %v862 = vadd.f32 %v858, 1.4214138
  %v863 = vmul.f32 %v859, %v840
  %v864 = vmul.f32 %v860, %v842
  %v865 = vmul.f32 %v861, %v844
  %v866 = vmul.f32 %v862, %v846
  %v867 = vadd.f32 %v863, -0.28449672
  %v868 = vadd.f32 %v864, -0.28449672
  %v869 = vadd.f32 %v865, -0.28449672
  %v870 = vadd.f32 %v866, -0.28449672
  %v871 = vmul.f32 %v867, %v840
  %v872 = vmul.f32 %v868, %v842
  %v873 = vmul.f32 %v869, %v844
  %v874 = vmul.f32 %v870, %v846
  %v875 = vadd.f32 %v871, 0.2548296
  %v876 = vadd.f32 %v872, 0.2548296
  %v877 = vadd.f32 %v873, 0.2548296
  %v878 = vadd.f32 %v874, 0.2548296
  %v879 = vmul.f32 %v875, %v840
  %v880 = vmul.f32 %v876, %v842
  %v881 = vmul.f32 %v877, %v844
  %v882 = vmul.f32 %v878, %v846
  %v883 = vsub.f32 0.0, %v827
  %v884 = vsub.f32 0.0, %v828
  %v885 = vsub.f32 0.0, %v829
  %v886 = vsub.f32 0.0, %v830
  %v887 = vmul.f32 %v883, %v827
  %v888 = vmul.f32 %v884, %v828
  %v889 = vmul.f32 %v885, %v829
  %v890 = vmul.f32 %v886, %v830
  %v891 = vmul.f32 %v887, 1.442695
  %v892 = vpow.pop %v891
  %v893 = vmul.f32 %v888, 1.442695
  %v894 = vpow.pop %v893
  %v895 = vmul.f32 %v889, 1.442695
  %v896 = vpow.pop %v895
  %v897 = vmul.f32 %v890, 1.442695
  %v898 = vpow.pop %v897
  %v899 = vmul.f32 %v879, %v892
  %v900 = vmul.f32 %v880, %v894
  %v901 = vmul.f32 %v881, %v896
  %v902 = vmul.f32 %v882, %v898
  %v903 = vsub.f32 1.0, %v899
  %v904 = vsub.f32 1.0, %v900
  %v905 = vsub.f32 1.0, %v901
  %v906 = vsub.f32 1.0, %v902
  %v907 = vmul.f32 %v823, %v903
  %v908 = vmul.f32 %v824, %v904
  %v909 = vmul.f32 %v825, %v905
  %v910 = vmul.f32 %v826, %v906
  %v911 = vadd.f32 %v907, 1.0
  %v912 = vadd.f32 %v908, 1.0
  %v913 = vadd.f32 %v909, 1.0
  %v914 = vadd.f32 %v910, 1.0
  %v915 = vmul.f32 %v811, %v911
  %v916 = vmul.f32 %v812, %v912
  %v917 = vmul.f32 %v813, %v913
  %v918 = vmul.f32 %v814, %v914
  %v919 = vld [vmem:[%s10] sm:$0xff]
  %v920 = vld [vmem:[%s10 + $0x8] sm:$0xff]
  %v921 = vld [vmem:[%s10 + $0x10] sm:$0xff]
  %v922 = vld [vmem:[%s10 + $0x18] sm:$0xff]
  %v923 = vld [vmem:[%s10 + $0x20] sm:$0xff]
  %v924 = vld [vmem:[%s10 + $0x28] sm:$0xff]
  %v925 = vld [vmem:[%s10 + $0x30] sm:$0xff]
  %v926 = vld [vmem:[%s10 + $0x38] sm:$0xff]
  %v927 = vld [vmem:[%s10 + $0x40] sm:$0xff]
  %v928 = vld [vmem:[%s10 + $0x48] sm:$0xff]
  %v929 = vld [vmem:[%s10 + $0x50] sm:$0xff]
  %v930 = vld [vmem:[%s10 + $0x58] sm:$0xff]
  %v931 = vld [vmem:[%s10 + $0x60] sm:$0xff]
  %v932 = vld [vmem:[%s10 + $0x68] sm:$0xff]
  %v933 = vld [vmem:[%s10 + $0x70] sm:$0xff]
  %v934 = vld [vmem:[%s10 + $0x78] sm:$0xff]
  %v935 = vld [vmem:[%s10 + $0x80] sm:$0xff]
  %v936 = vld [vmem:[%s10 + $0x88] sm:$0xff]
  %v937 = vld [vmem:[%s10 + $0x90] sm:$0xff]
  %v938 = vld [vmem:[%s10 + $0x98] sm:$0xff]
  %v939 = vld [vmem:[%s10 + $0xa0] sm:$0xff]
  %v940 = vld [vmem:[%s10 + $0xa8] sm:$0xff]
  %v941 = vld [vmem:[%s10 + $0xb0] sm:$0xff]
  %v942 = vld [vmem:[%s10 + $0xb8] sm:$0xff]
  %v943 = vld [vmem:[%s10 + $0xc0] sm:$0xff]
  %v944 = vld [vmem:[%s10 + $0xc8] sm:$0xff]
  %v945 = vld [vmem:[%s10 + $0xd0] sm:$0xff]
  %v946 = vld [vmem:[%s10 + $0xd8] sm:$0xff]
  %v947 = vld [vmem:[%s10 + $0xe0] sm:$0xff]
  %v948 = vld [vmem:[%s10 + $0xe8] sm:$0xff]
  %v949 = vld [vmem:[%s10 + $0xf0] sm:$0xff]
  %v950 = vld [vmem:[%s10 + $0xf8] sm:$0xff]
  %v951 = vld [vmem:[%s11] sm:$0x1]
  %v953 = vlaneseq
  %v954 = vshrl.u32 %v953, 7
  %v955 = vsub.s32 0, %v954
  %v956 = vrot.slane %v951, %v955
  %958 = vmatprep.subr.mxu0 0.0
  %959 = vmatpush1.msra.mxu0 %v919
  %960 = vmatprep.subr.mxu0 0.0
  %961 = vmatpush1.msra.mxu0 %v920
  %962 = vmatprep.subr.mxu0 0.0
  %963 = vmatpush1.msra.mxu0 %v921
  %964 = vmatprep.subr.mxu0 0.0
  %965 = vmatpush1.msra.mxu0 %v922
  %966 = vmatprep.subr.mxu0 0.0
  %967 = vmatpush1.msra.mxu0 %v923
  %968 = vmatprep.subr.mxu0 0.0
  %969 = vmatpush1.msra.mxu0 %v924
  %970 = vmatprep.subr.mxu0 0.0
  %971 = vmatpush1.msra.mxu0 %v925
  %972 = vmatprep.subr.mxu0 0.0
  %973 = vmatpush1.msra.mxu0 %v926
  %974 = vmatprep.subr.mxu0 0.0
  %975 = vmatpush1.msra.mxu0 %v927
  %976 = vmatprep.subr.mxu0 0.0
  %977 = vmatpush1.msra.mxu0 %v928
  %978 = vmatprep.subr.mxu0 0.0
  %979 = vmatpush1.msra.mxu0 %v929
  %980 = vmatprep.subr.mxu0 0.0
  %981 = vmatpush1.msra.mxu0 %v930
  %982 = vmatprep.subr.mxu0 0.0
  %983 = vmatpush1.msra.mxu0 %v931
  %984 = vmatprep.subr.mxu0 0.0
  %985 = vmatpush1.msra.mxu0 %v932
  %986 = vmatprep.subr.mxu0 0.0
  %987 = vmatpush1.msra.mxu0 %v933
  %988 = vmatprep.subr.mxu0 0.0
  %989 = vmatpush1.msra.mxu0 %v934
  %990 = vmatprep.subr.mxu0 0.0
  %991 = vmatpush1.msra.mxu0 %v935
  %992 = vmatprep.subr.mxu0 0.0
  %993 = vmatpush1.msra.mxu0 %v936
  %994 = vmatprep.subr.mxu0 0.0
  %995 = vmatpush1.msra.mxu0 %v937
  %996 = vmatprep.subr.mxu0 0.0
  %997 = vmatpush1.msra.mxu0 %v938
  %998 = vmatprep.subr.mxu0 0.0
  %999 = vmatpush1.msra.mxu0 %v939
  %1000 = vmatprep.subr.mxu0 0.0
  %1001 = vmatpush1.msra.mxu0 %v940
  %1002 = vmatprep.subr.mxu0 0.0
  %1003 = vmatpush1.msra.mxu0 %v941
  %1004 = vmatprep.subr.mxu0 0.0
  %1005 = vmatpush1.msra.mxu0 %v942
  %1006 = vmatprep.subr.mxu0 0.0
  %1007 = vmatpush1.msra.mxu0 %v943
  %1008 = vmatprep.subr.mxu0 0.0
  %1009 = vmatpush1.msra.mxu0 %v944
  %1010 = vmatprep.subr.mxu0 0.0
  %1011 = vmatpush1.msra.mxu0 %v945
  %1012 = vmatprep.subr.mxu0 0.0
  %1013 = vmatpush1.msra.mxu0 %v946
  %1014 = vmatprep.subr.mxu0 0.0
  %1015 = vmatpush1.msra.mxu0 %v947
  %1016 = vmatprep.subr.mxu0 0.0
  %1017 = vmatpush1.msra.mxu0 %v948
  %1018 = vmatprep.subr.mxu0 0.0
  %1019 = vmatpush1.msra.mxu0 %v949
  %1020 = vmatprep.subr.mxu0 0.0
  %1021 = vmatpush1.msra.mxu0 %v950
  %1022 = vmatprep.mubr.f32.mxu0 %v916
  %1023 = vmatmul.mubr.f32.gmra.mrb[0].mxu0 %v915
  %v1024 = vpop.f32.mrb[0].mxu0
  %v1025 = vadd.f32 %v956, %v1024
  %v1026 = vpop.f32.mrb[0].mxu0
  %1027 = vmatprep.mubr.f32.mxu0 %v918
  %1028 = vmatmul.mubr.f32.gmra.mrb[0].mxu0 %v917
  %v1029 = vpop.f32.mrb[0].mxu0
  %v1030 = vadd.f32 %v956, %v1029
  %v1031 = vpop.f32.mrb[0].mxu0
  %1032 = vdwg.mxu0
  %v1033 = vadd.f32 %v654, %v1025
  %v1034 = vadd.f32 %v655, %v1030
  %1035 = vst.msk [vmem:[%s12] sm:$0xff] %vm45, %v1033
  %1036 = vst.msk [vmem:[%s12 + $0x8] sm:$0x3] %vm49, %v1034
  // Predicated region
  $region50: #{maxvit_forward.5} parent=0 // pred_check
    _
  $region51: #{maxvit_forward.5} parent=0 // pred_check_branch
    %1038 = sbr.rel (0) target = $region53
  $region52: #{maxvit_forward.5} parent=0 // pred_region
    _
  $region53: #{maxvit_forward.5} parent=0 // pred_fallthru
    _
  // Predicated region
  $region54: #{maxvit_forward.5} parent=0 // pred_check
    _
  $region55: #{maxvit_forward.5} parent=0 // pred_check_branch
    %1040 = sbr.rel (0) target = $region57
  $region56: #{maxvit_forward.5} parent=0 // pred_region
    _
  $region57: #{maxvit_forward.5} parent=0 // pred_fallthru
    _

</llo_original>
